<compile_context>
chip_gen: v7x
topology: tpu7x:2x2x1
jax: 0.10.0
libtpu: 0.0.40
codegen_flags: <defaults>
</compile_context>

<pallas_src>
import functools

import jax
import jax.numpy as jnp
from jax.experimental import pallas as pl
from jax.experimental.pallas import tpu as pltpu

_LANE = 128
_ROW_ALIGN = 256   # MXU-friendly on v6e/v7x (2x256 MXU) and a multiple of v5e's native 128


def _round_up(x, m):
    return ((x + m - 1) // m) * m


@functools.lru_cache(maxsize=1)
def _vmem_budget_bytes():
    """Usable-VMEM budget per generation (~48 MiB on v7x, ~96 MiB on v5e/v6e)."""
    cap = 64 * 1024 * 1024  # conservative fallback = v7x physical VMEM per TensorCore
    try:
        cap = int(pltpu.get_tpu_info().vmem_capacity_bytes)
    except Exception:
        pass
    return min(int(cap * 3 // 4), 100 * 1024 * 1024)


# ----------------------------------------------------------------------------
# Fused path: all K hops + classify in ONE kernel, A_hat / h resident in VMEM.
# ----------------------------------------------------------------------------
def _fused_sgc_kernel(a_ref, x_ref, w_ref, b_ref, o_ref, h0_ref, h1_ref, *,
                      do_prop, final_slot):
    t = pl.program_id(0)

    @pl.when(t == 0)
    def _init():
        h0_ref[...] = x_ref[...].astype(jnp.float32)   # h_0 lives in slot 0 (f32)

    if do_prop:
        is_even = jax.lax.rem(t, 2) == 0

        @pl.when(is_even)
        def _hop_even():      # even hop: slot0 -> slot1
            h1_ref[...] = jnp.dot(a_ref[...], h0_ref[...].astype(jnp.bfloat16),
                                  preferred_element_type=jnp.float32)

        @pl.when(jnp.logical_not(is_even))
        def _hop_odd():       # odd hop: slot1 -> slot0
            h0_ref[...] = jnp.dot(a_ref[...], h1_ref[...].astype(jnp.bfloat16),
                                  preferred_element_type=jnp.float32)

    @pl.when(t == pl.num_programs(0) - 1)
    def _classify():
        # final_slot is static (K % 2), so this is a compile-time buffer choice.
        h_final = h0_ref[...] if final_slot == 0 else h1_ref[...]
        # Padded class lanes carry -1e30 in b_ref, so they vanish from the softmax.
        logits = jnp.dot(h_final.astype(jnp.bfloat16), w_ref[...],
                         preferred_element_type=jnp.float32) + b_ref[...]
        m = jnp.max(logits, axis=1, keepdims=True)
        shifted = logits - m
        lse = jnp.log(jnp.sum(jnp.exp(shifted), axis=1, keepdims=True))
        o_ref[...] = shifted - lse


def _sgc_fused(a_pad, x_pad, w_pad, b_pad, k):
    np_, fp = x_pad.shape
    cpad = w_pad.shape[1]
    num_hops = max(k, 1)
    kernel = functools.partial(
        _fused_sgc_kernel,
        do_prop=(k > 0),
        final_slot=(k % 2) if k > 0 else 0,
    )
    return pl.pallas_call(
        kernel,
        out_shape=jax.ShapeDtypeStruct((np_, cpad), jnp.float32),
        grid_spec=pltpu.PrefetchScalarGridSpec(
            num_scalar_prefetch=0,
            grid=(num_hops,),
            in_specs=[
                pl.BlockSpec((np_, np_), lambda t: (0, 0)),   # A_hat: resident
                pl.BlockSpec((np_, fp), lambda t: (0, 0)),    # X: resident
                pl.BlockSpec((fp, cpad), lambda t: (0, 0)),   # W: resident
                pl.BlockSpec((1, cpad), lambda t: (0, 0)),    # b (padded lanes = -1e30)
            ],
            out_specs=pl.BlockSpec((np_, cpad), lambda t: (0, 0)),
            scratch_shapes=[pltpu.VMEM((np_, fp), jnp.float32),   # h ping
                            pltpu.VMEM((np_, fp), jnp.float32)],  # h pong
        ),
        compiler_params=pltpu.CompilerParams(
            dimension_semantics=("arbitrary",),            # hops are sequential
            vmem_limit_bytes=_vmem_budget_bytes(),
        ),
    )(a_pad, x_pad, w_pad, b_pad)


def _fused_vmem_bytes(np_, fp, cpad):
    in_out = (np_ * np_ * 2 + np_ * fp * 2 + fp * cpad * 2 + cpad * 4
              + np_ * cpad * 4)
    scratch = 2 * np_ * fp * 4
    return 2 * in_out + scratch   # x2: worst-case double buffering of resident blocks


# ----------------------------------------------------------------------------
# Streaming tiled path (large graphs): per-hop matmul; last hop fuses classify.
# ----------------------------------------------------------------------------
def _spmm_kernel(a_ref, x_ref, o_ref, acc_ref):
    @pl.when(pl.program_id(1) == 0)
    def _init():
        acc_ref[...] = jnp.zeros_like(acc_ref)

    acc_ref[...] += jnp.dot(a_ref[...], x_ref[...], preferred_element_type=jnp.float32)

    @pl.when(pl.program_id(1) == pl.num_programs(1) - 1)
    def _store():
        o_ref[...] = acc_ref[...].astype(o_ref.dtype)


def _spmm_classify_kernel(a_ref, x_ref, w_ref, b_ref, o_ref, acc_ref):
    @pl.when(pl.program_id(1) == 0)
    def _init():
        acc_ref[...] = jnp.zeros_like(acc_ref)

    acc_ref[...] += jnp.dot(a_ref[...], x_ref[...], preferred_element_type=jnp.float32)

    @pl.when(pl.program_id(1) == pl.num_programs(1) - 1)
    def _classify():
        logits = jnp.dot(acc_ref[...].astype(jnp.bfloat16), w_ref[...],
                         preferred_element_type=jnp.float32) + b_ref[...]
        m = jnp.max(logits, axis=1, keepdims=True)
        shifted = logits - m
        lse = jnp.log(jnp.sum(jnp.exp(shifted), axis=1, keepdims=True))
        o_ref[...] = shifted - lse


def _choose_tiles(np_, fp, cpad, budget):
    # Review targets: tm=256, tk=512 (85% of HBM roofline vs 29% at 128), but keep
    # >= 2 "parallel" row steps so both v7x TensorCores get work, and stay in budget.
    tk = 512 if np_ % 512 == 0 else 256
    tm = 256
    if np_ // tm < 2:
        tm = np_ // 2          # np_ is a multiple of 256 -> tm is a multiple of 128

    def _need(tm_, tk_):
        return (2 * tm_ * tk_ * 2            # A tile, double buffered (bf16)
                + 2 * tk_ * fp * 2           # X panel, double buffered (bf16)
                + 2 * fp * cpad * 2          # W (bf16)
                + 2 * cpad * 4               # b (f32)
                + tm_ * fp * 4               # f32 accumulator
                + 2 * tm_ * max(2 * fp, 4 * cpad))   # output, double buffered

    while _need(tm, tk) > budget and tk > 256:
        tk //= 2
    while _need(tm, tk) > budget and tm > 128:
        tm //= 2
    return tm, tk


def _propagate(a_pad, h_pad, *, tm, tk):
    np_ = a_pad.shape[0]
    fp = h_pad.shape[1]
    return pl.pallas_call(
        _spmm_kernel,
        out_shape=jax.ShapeDtypeStruct((np_, fp), jnp.bfloat16),
        grid_spec=pltpu.PrefetchScalarGridSpec(
            num_scalar_prefetch=0,
            grid=(np_ // tm, np_ // tk),
            in_specs=[
                pl.BlockSpec((tm, tk), lambda i, j: (i, j)),
                pl.BlockSpec((tk, fp), lambda i, j: (j, 0)),
            ],
            out_specs=pl.BlockSpec((tm, fp), lambda i, j: (i, 0)),
            scratch_shapes=[pltpu.VMEM((tm, fp), jnp.float32)],
        ),
        compiler_params=pltpu.CompilerParams(
            dimension_semantics=("parallel", "arbitrary"),
            vmem_limit_bytes=_vmem_budget_bytes(),
        ),
    )(a_pad, h_pad)


def _propagate_classify(a_pad, h_pad, w_pad, b_pad, *, tm, tk):
    np_ = a_pad.shape[0]
    fp = h_pad.shape[1]
    cpad = w_pad.shape[1]
    return pl.pallas_call(
        _spmm_classify_kernel,
        out_shape=jax.ShapeDtypeStruct((np_, cpad), jnp.float32),
        grid_spec=pltpu.PrefetchScalarGridSpec(
            num_scalar_prefetch=0,
            grid=(np_ // tm, np_ // tk),
            in_specs=[
                pl.BlockSpec((tm, tk), lambda i, j: (i, j)),
                pl.BlockSpec((tk, fp), lambda i, j: (j, 0)),
                pl.BlockSpec((fp, cpad), lambda i, j: (0, 0)),
                pl.BlockSpec((1, cpad), lambda i, j: (0, 0)),
            ],
            out_specs=pl.BlockSpec((tm, cpad), lambda i, j: (i, 0)),
            scratch_shapes=[pltpu.VMEM((tm, fp), jnp.float32)],
        ),
        compiler_params=pltpu.CompilerParams(
            dimension_semantics=("parallel", "arbitrary"),
            vmem_limit_bytes=_vmem_budget_bytes(),
        ),
    )(a_pad, h_pad, w_pad, b_pad)


# ----------------------------------------------------------------------------
# Graph normalization (dense equivalent of gcn_norm with self loops) — JAX glue.
# ----------------------------------------------------------------------------
def _gcn_norm_dense(adj):
    n = adj.shape[0]
    a_hat = adj.astype(jnp.float32) + jnp.eye(n, dtype=jnp.float32)
    deg = jnp.sum(a_hat, axis=1)
    d_inv_sqrt = jnp.where(deg > 0, jax.lax.rsqrt(deg), 0.0)
    return d_inv_sqrt[:, None] * a_hat * d_inv_sqrt[None, :]


# ----------------------------------------------------------------------------
# Full SGC forward
# ----------------------------------------------------------------------------
def sgc_forward(adj, x, w, b, k, *, force_tiled=False):
    n, f = x.shape
    c = w.shape[1]
    np_ = _round_up(n, _ROW_ALIGN)
    fp = _round_up(f, _LANE)
    cpad = _round_up(max(c, 1), _LANE)
    budget = _vmem_budget_bytes()

    # One-time graph normalization (setup, not the hot path) + zero padding.
    # Zero rows/cols are mathematically inert for A_hat @ x.
    a_norm = _gcn_norm_dense(adj)
    a_pad = jnp.zeros((np_, np_), jnp.bfloat16).at[:n, :n].set(a_norm.astype(jnp.bfloat16))

    # F.dropout(x, p, training=False) is the identity (inference semantics).
    # TODO(synk): training-mode dropout (random masking) not implemented.
    x_pad = jnp.zeros((np_, fp), jnp.bfloat16).at[:n, :f].set(x.astype(jnp.bfloat16))
    w_pad = jnp.zeros((fp, cpad), jnp.bfloat16).at[:f, :c].set(w.astype(jnp.bfloat16))
    # Padded class lanes get -1e30 so they vanish from the softmax inside the kernels.
    b_pad = jnp.full((1, cpad), -1e30, jnp.float32).at[0, :c].set(b.astype(jnp.float32))

    fits_fused = _fused_vmem_bytes(np_, fp, cpad) <= budget
    if (fits_fused and not force_tiled) or k == 0:
        # TODO(synk): k == 0 on graphs too large for VMEM would need a row-tiled
        # classify-only kernel; not needed for SGC in practice (K >= 1).
        out_pad = _sgc_fused(a_pad, x_pad, w_pad, b_pad, k)
    else:
        tm, tk = _choose_tiles(np_, fp, cpad, budget)
        h = x_pad
        for _ in range(k - 1):
            h = _propagate(a_pad, h, tm=tm, tk=tk)
        out_pad = _propagate_classify(a_pad, h, w_pad, b_pad, tm=tm, tk=tk)

    return out_pad[:n, :c]


# Pure-JAX f32 reference for sanity checks.
def _sgc_reference(adj, x, w, b, k):
    a_norm = _gcn_norm_dense(adj)
    h = x
    for _ in range(k):
        h = a_norm @ h
    return jax.nn.log_softmax(h @ w + b[None, :], axis=1)


# ----------------------------------------------------------------------------
# Deterministic example run
# ----------------------------------------------------------------------------
if __name__ == "__main__":
    key = jax.random.PRNGKey(0)
    k_x, k_adj, k_w, k_b = jax.random.split(key, 4)

    N, FEAT, CLASSES, K = 256, 128, 8, 2

    x = jax.random.normal(k_x, (N, FEAT), dtype=jnp.float32)

    # Random symmetric adjacency (~5% dense) without self loops (gcn_norm adds them).
    upper = (jax.random.uniform(k_adj, (N, N)) < 0.05).astype(jnp.float32)
    adj = jnp.triu(upper, 1)
    adj = adj + adj.T

    # torch.nn.Linear default init: uniform(-1/sqrt(fan_in), 1/sqrt(fan_in)).
    bound = 1.0 / (FEAT ** 0.5)
    w = jax.random.uniform(k_w, (FEAT, CLASSES), jnp.float32, -bound, bound)
    b = jax.random.uniform(k_b, (CLASSES,), jnp.float32, -bound, bound)

    ref = _sgc_reference(adj, x, w, b, K)

    # Fused single-kernel path (A_hat + h resident in VMEM, K hops + classify in one call).
    out_fused = jax.block_until_ready(sgc_forward(adj, x, w, b, K))
    # Streaming tiled path (what large graphs would use) to exercise both kernels.
    out_tiled = jax.block_until_ready(sgc_forward(adj, x, w, b, K, force_tiled=True))

    for out in (out_fused, out_tiled):
        assert out.shape == (N, CLASSES)
        assert bool(jnp.all(jnp.isfinite(out)))
        # log-probabilities must exponentiate to a distribution (computed in f32).
        row_sums = jnp.sum(jnp.exp(out), axis=1)
        assert bool(jnp.all(jnp.abs(row_sums - 1.0) < 1e-3))
        # Loose comparison vs the f32 reference (bf16 MXU inputs -> ~1e-2 differences).
        assert bool(jnp.max(jnp.abs(out - ref)) < 0.2)

    # The two paths apply identical bf16 rounding per hop -> should agree closely.
    assert bool(jnp.max(jnp.abs(out_fused - out_tiled)) < 0.1)

    print("KERNEL_OK")
</pallas_src>

<mosaic_0001>
module attributes {stable_mosaic.version = 11 : i64} {
  func.func @_fused_sgc_kernel(%arg0: i32, %arg1: memref<256x256xbf16, #tpu.memory_space<vmem>>, %arg2: memref<256x128xbf16, #tpu.memory_space<vmem>>, %arg3: memref<128x128xbf16, #tpu.memory_space<vmem>>, %arg4: memref<1x128xf32, #tpu.memory_space<vmem>>, %arg5: memref<256x128xf32, #tpu.memory_space<vmem>>, %arg6: memref<256x128xf32, #tpu.memory_space<vmem>>, %arg7: memref<256x128xf32, #tpu.memory_space<vmem>>) attributes {dimension_semantics = [#tpu.dimension_semantics<arbitrary>], iteration_bounds = array<i64: 2>, scalar_prefetch = 0 : i64, scratch_operands = 2 : i64, tpu.core_type = #tpu.core_type<tc>, window_params = [{pipeline_mode = #tpu.pipeline_mode<synchronous>, transform_indices = @transform_0, window_bounds = array<i64: 256, 256>}, {pipeline_mode = #tpu.pipeline_mode<synchronous>, transform_indices = @transform_1, window_bounds = array<i64: 256, 128>}, {pipeline_mode = #tpu.pipeline_mode<synchronous>, transform_indices = @transform_2, window_bounds = array<i64: 128, 128>}, {pipeline_mode = #tpu.pipeline_mode<synchronous>, transform_indices = @transform_3, window_bounds = array<i64: 1, 128>}, {pipeline_mode = #tpu.pipeline_mode<synchronous>, transform_indices = @transform_4, window_bounds = array<i64: 256, 128>}]} {
    %c0_i32 = arith.constant 0 : i32
    %0 = arith.cmpi eq, %arg0, %c0_i32 : i32
    %1 = arith.extui %0 : i1 to i32
    %c0_i32_0 = arith.constant 0 : i32
    %2 = arith.cmpi ne, %1, %c0_i32_0 : i32
    scf.if %2 {
      %c0 = arith.constant 0 : index
      %c0_5 = arith.constant 0 : index
      %13 = vector.load %arg2[%c0, %c0_5] : memref<256x128xbf16, #tpu.memory_space<vmem>>, vector<256x128xbf16>
      %14 = arith.extf %13 : vector<256x128xbf16> to vector<256x128xf32>
      %c0_6 = arith.constant 0 : index
      %c0_7 = arith.constant 0 : index
      %15 = vector.load %arg6[%c0_6, %c0_7] : memref<256x128xf32, #tpu.memory_space<vmem>>, vector<256x128xf32>
      tpu.vector_store %arg6[%c0_6, %c0_7], %14 {strides = array<i32>} : memref<256x128xf32, #tpu.memory_space<vmem>>, vector<256x128xf32>,
    } else {
    }
    %c2_i32 = arith.constant 2 : i32
    %3 = arith.remsi %arg0, %c2_i32 : i32
    %c0_i32_1 = arith.constant 0 : i32
    %4 = arith.cmpi eq, %3, %c0_i32_1 : i32
    %5 = arith.extui %4 : i1 to i32
    %c0_i32_2 = arith.constant 0 : i32
    %6 = arith.cmpi ne, %5, %c0_i32_2 : i32
    scf.if %6 {
      %c0 = arith.constant 0 : index
      %c0_5 = arith.constant 0 : index
      %13 = vector.load %arg1[%c0, %c0_5] : memref<256x256xbf16, #tpu.memory_space<vmem>>, vector<256x256xbf16>
      %c0_6 = arith.constant 0 : index
      %c0_7 = arith.constant 0 : index
      %14 = vector.load %arg6[%c0_6, %c0_7] : memref<256x128xf32, #tpu.memory_space<vmem>>, vector<256x128xf32>
      %15 = arith.truncf %14 : vector<256x128xf32> to vector<256x128xbf16>
      %cst = arith.constant dense<0.000000e+00> : vector<256x128xf32>
      %16 = tpu.matmul %13, %15, %cst {dimension_numbers = #tpu.dot_dimension_numbers<[1], [0], [0], [1], [0, 0, 1, 1], [], []>} : vector<256x256xbf16>, vector<256x128xbf16>, vector<256x128xf32> -> vector<256x128xf32>
      %c0_8 = arith.constant 0 : index
      %c0_9 = arith.constant 0 : index
      %17 = vector.load %arg7[%c0_8, %c0_9] : memref<256x128xf32, #tpu.memory_space<vmem>>, vector<256x128xf32>
      tpu.vector_store %arg7[%c0_8, %c0_9], %16 {strides = array<i32>} : memref<256x128xf32, #tpu.memory_space<vmem>>, vector<256x128xf32>,
    } else {
    }
    %true = arith.constant true
    %7 = arith.xori %4, %true : i1
    %8 = arith.extui %7 : i1 to i32
    %c0_i32_3 = arith.constant 0 : i32
    %9 = arith.cmpi ne, %8, %c0_i32_3 : i32
    scf.if %9 {
      %c0 = arith.constant 0 : index
      %c0_5 = arith.constant 0 : index
      %13 = vector.load %arg1[%c0, %c0_5] : memref<256x256xbf16, #tpu.memory_space<vmem>>, vector<256x256xbf16>
      %c0_6 = arith.constant 0 : index
      %c0_7 = arith.constant 0 : index
      %14 = vector.load %arg7[%c0_6, %c0_7] : memref<256x128xf32, #tpu.memory_space<vmem>>, vector<256x128xf32>
      %15 = arith.truncf %14 : vector<256x128xf32> to vector<256x128xbf16>
      %cst = arith.constant dense<0.000000e+00> : vector<256x128xf32>
      %16 = tpu.matmul %13, %15, %cst {dimension_numbers = #tpu.dot_dimension_numbers<[1], [0], [0], [1], [0, 0, 1, 1], [], []>} : vector<256x256xbf16>, vector<256x128xbf16>, vector<256x128xf32> -> vector<256x128xf32>
      %c0_8 = arith.constant 0 : index
      %c0_9 = arith.constant 0 : index
      %17 = vector.load %arg6[%c0_8, %c0_9] : memref<256x128xf32, #tpu.memory_space<vmem>>, vector<256x128xf32>
      tpu.vector_store %arg6[%c0_8, %c0_9], %16 {strides = array<i32>} : memref<256x128xf32, #tpu.memory_space<vmem>>, vector<256x128xf32>,
    } else {
    }
    %c1_i32 = arith.constant 1 : i32
    %10 = arith.cmpi eq, %arg0, %c1_i32 : i32
    %11 = arith.extui %10 : i1 to i32
    %c0_i32_4 = arith.constant 0 : i32
    %12 = arith.cmpi ne, %11, %c0_i32_4 : i32
    scf.if %12 {
      %c0 = arith.constant 0 : index
      %c0_5 = arith.constant 0 : index
      %13 = vector.load %arg6[%c0, %c0_5] : memref<256x128xf32, #tpu.memory_space<vmem>>, vector<256x128xf32>
      %14 = arith.truncf %13 : vector<256x128xf32> to vector<256x128xbf16>
      %c0_6 = arith.constant 0 : index
      %c0_7 = arith.constant 0 : index
      %15 = vector.load %arg3[%c0_6, %c0_7] : memref<128x128xbf16, #tpu.memory_space<vmem>>, vector<128x128xbf16>
      %cst = arith.constant dense<0.000000e+00> : vector<256x128xf32>
      %16 = tpu.matmul %14, %15, %cst {dimension_numbers = #tpu.dot_dimension_numbers<[1], [0], [0], [1], [0, 0, 1, 1], [], []>} : vector<256x128xbf16>, vector<128x128xbf16>, vector<256x128xf32> -> vector<256x128xf32>
      %c0_8 = arith.constant 0 : index
      %c0_9 = arith.constant 0 : index
      %17 = vector.load %arg4[%c0_8, %c0_9] : memref<1x128xf32, #tpu.memory_space<vmem>>, vector<1x128xf32>
      %18 = vector.broadcast %17 : vector<1x128xf32> to vector<256x128xf32>
      %19 = arith.addf %16, %18 : vector<256x128xf32>
      %cst_10 = arith.constant dense<0xFF800000> : vector<256xf32>
      %20 = vector.multi_reduction <maximumf>, %19, %cst_10 [1] : vector<256x128xf32> to vector<256xf32>
      %21 = vector.shape_cast %20 : vector<256xf32> to vector<256x1xf32>
      %22 = vector.broadcast %21 : vector<256x1xf32> to vector<256x128xf32>
      %23 = arith.subf %19, %22 : vector<256x128xf32>
      %24 = math.exp %23 : vector<256x128xf32>
      %cst_11 = arith.constant dense<0.000000e+00> : vector<256xf32>
      %25 = vector.multi_reduction <add>, %24, %cst_11 [1] : vector<256x128xf32> to vector<256xf32>
      %26 = vector.shape_cast %25 : vector<256xf32> to vector<256x1xf32>
      %27 = math.log %26 : vector<256x1xf32>
      %28 = vector.broadcast %27 : vector<256x1xf32> to vector<256x128xf32>
      %29 = arith.subf %23, %28 : vector<256x128xf32>
      %c0_12 = arith.constant 0 : index
      %c0_13 = arith.constant 0 : index
      %30 = vector.load %arg5[%c0_12, %c0_13] : memref<256x128xf32, #tpu.memory_space<vmem>>, vector<256x128xf32>
      tpu.vector_store %arg5[%c0_12, %c0_13], %29 {strides = array<i32>} : memref<256x128xf32, #tpu.memory_space<vmem>>, vector<256x128xf32>,
    } else {
    }
    return
  }
  func.func @transform_0(%arg0: i32) -> (i32, i32) {
    %c0_i32 = arith.constant 0 : i32
    %c0_i32_0 = arith.constant 0 : i32
    %c0_i32_1 = arith.constant 0 : i32
    return %c0_i32, %c0_i32_0 : i32, i32
  }
  func.func @transform_1(%arg0: i32) -> (i32, i32) {
    %c0_i32 = arith.constant 0 : i32
    %c0_i32_0 = arith.constant 0 : i32
    %c0_i32_1 = arith.constant 0 : i32
    return %c0_i32, %c0_i32_0 : i32, i32
  }
  func.func @transform_2(%arg0: i32) -> (i32, i32) {
    %c0_i32 = arith.constant 0 : i32
    %c0_i32_0 = arith.constant 0 : i32
    %c0_i32_1 = arith.constant 0 : i32
    return %c0_i32, %c0_i32_0 : i32, i32
  }
  func.func @transform_3(%arg0: i32) -> (i32, i32) {
    %c0_i32 = arith.constant 0 : i32
    %c0_i32_0 = arith.constant 0 : i32
    %c0_i32_1 = arith.constant 0 : i32
    return %c0_i32, %c0_i32_0 : i32, i32
  }
  func.func @transform_4(%arg0: i32) -> (i32, i32) {
    %c0_i32 = arith.constant 0 : i32
    %c0_i32_0 = arith.constant 0 : i32
    %c0_i32_1 = arith.constant 0 : i32
    return %c0_i32, %c0_i32_0 : i32, i32
  }
}

</mosaic_0001>

<llo_original>
// kernel: tpu_custom_call.1
$region0: #{tpu_custom_call.1}
  #allocation0 [shape = 'u32[]', space=smem, size = 0x4, offset = 0x4, fixed_abs, tag = 'smem constant byte address 0x4 - core index']
  #allocation1 [shape = 'u32[144,128]{1,0:T(1,128)}', space=vmem, size = 0x12000, scoped, tag = 'internal scratch']
  #allocation2 [shape = 'f32[256,128]{1,0:T(8,128)}', space=vmem, size = 0x20000, scoped, tag = 'scratch operand']
  #allocation3 [shape = 'f32[256,128]{1,0:T(8,128)}', space=vmem, size = 0x20000, scoped, tag = 'scratch operand']
  %s0 = inlined_call_operand.hbm [shape: bf16[256,256], index: 0, kind: input, shape index: {}]
  %s1 = inlined_call_operand.hbm [shape: bf16[256,128], index: 1, kind: input, shape index: {}]
  %s2 = inlined_call_operand.hbm [shape: bf16[128,128], index: 2, kind: input, shape index: {}]
  %s3 = inlined_call_operand.vmem [shape: f32[1,128], index: 3, kind: input, shape index: {}]
  %s4 = inlined_call_operand.hbm [shape: f32[256,128], index: 4, kind: output, shape index: {}]
  %s5 = sld [smem:[#allocation0]]
  $region77: #{tpu_custom_call.1} parent=0
    _
  %s7 = ssub.s32 1, %s5
  %s8 = scalar_select 0, %s7, %s5
  $region1: #{tpu_custom_call.1} parent=0
    #allocation4 [shape = 'u8[131072]{0}', space=vmem, size = 0x20000, scoped, tag = 'input window, operand 0, single buffered']
    #allocation5 [shape = 's32[2]{0}', space=sflag, size = 0x8, scoped, tag = 'scoped memory for tpu_custom_call.1']
    #allocation6 [shape = 's32[2]{0}', space=sflag, size = 0x8, scoped, tag = 'scoped memory for tpu_custom_call.1']
    #allocation7 [shape = 'u8[65536]{0}', space=vmem, size = 0x10000, scoped, tag = 'input window, operand 1, single buffered']
    #allocation8 [shape = 's32[1]{0}', space=sflag, size = 0x4, scoped, tag = 'scoped memory for tpu_custom_call.1']
    #allocation9 [shape = 'u8[32768]{0}', space=vmem, size = 0x8000, scoped, tag = 'input window, operand 2, single buffered']
    #allocation10 [shape = 'u8[131072]{0}', space=vmem, size = 0x20000, scoped, tag = 'output window, operand 0, single buffered']
    %9 = vsyncpa [#allocation5], 0
    %10 = vsyncpa [#allocation8], 0
    %11 = vsyncpa [#allocation6], 0
    loop: start=0, step=1, limit=4
    $region2: #{tpu_custom_call.1} parent=1 // loop_pre_header
      _
    $region3: #{tpu_custom_call.1} parent=1 // loop_header
      %s13 = sphi 0, %s17
      %p14 = scmp.ge.s32.totalorder %s13, 4
      %s21 = sphi 0, %s21
      %s23 = sphi 0, %s21
      %s24 = sphi 0, %s23
      %s38 = sphi 0, %s24
      %s42 = sphi 0, %s42
      %s44 = sphi 0, %s42
      %s45 = sphi 0, %s44
      %s59 = sphi 0, %s45
      %s63 = sphi 0, %s63
      %s65 = sphi 0, %s63
      %s66 = sphi 0, %s65
      %s80 = sphi 0, %s66
      %s84 = sphi 0, %s84
      %s86 = sphi 0, %s84
      %s87 = sphi 0, %s86
      %s101 = sphi 0, %s87
      %s105 = sphi 0, %s105
      %s107 = sphi 0, %s105
      %s108 = sphi 0, %s107
      %s122 = sphi 0, %s108
    $region4: #{tpu_custom_call.1} parent=1 // loop_header_branch
      %16 = sbr.rel (%p14) target = $region8
    $region5: #{tpu_custom_call.1} parent=1 // loop_body
      %s18 = ssub.s32 %s13, 1
      %s19 = ssub.s32 %s13, 2
      %s20 = sadd.s32 %s13, 1
      %s22 = sadd.s32 %s21, 1
      %p25 = scmp.eq.s32.totalorder %s13, 1
      %p26 = scmp.ne.s32.totalorder %s21, %s23
      %p27 = scmp.eq.s32.totalorder %s13, 0
      %p28 = por %p26, %p27
      %p29 = scmp.ne.s32.totalorder %s21, %s23
      %p30 = scmp.eq.s32.totalorder %s18, 1
      %p31 = por %p29, %p30
      %p32 = scmp.ne.s32.totalorder %s23, %s24
      %p33 = scmp.eq.s32.totalorder %s18, 0
      %p34 = por %p32, %p33
      %p35 = scmp.ne.s32.totalorder %s23, %s24
      %p36 = scmp.eq.s32.totalorder %s19, 1
      %p37 = por %p35, %p36
      %p39 = scmp.ne.s32.totalorder %s24, %s38
      %p40 = scmp.eq.s32.totalorder %s19, 0
      %p41 = por %p39, %p40
      %s43 = sadd.s32 %s42, 1
      %p46 = scmp.eq.s32.totalorder %s13, 1
      %p47 = scmp.ne.s32.totalorder %s42, %s44
      %p48 = scmp.eq.s32.totalorder %s13, 0
      %p49 = por %p47, %p48
      %p50 = scmp.ne.s32.totalorder %s42, %s44
      %p51 = scmp.eq.s32.totalorder %s18, 1
      %p52 = por %p50, %p51
      %p53 = scmp.ne.s32.totalorder %s44, %s45
      %p54 = scmp.eq.s32.totalorder %s18, 0
      %p55 = por %p53, %p54
      %p56 = scmp.ne.s32.totalorder %s44, %s45
      %p57 = scmp.eq.s32.totalorder %s19, 1
      %p58 = por %p56, %p57
      %p60 = scmp.ne.s32.totalorder %s45, %s59
      %p61 = scmp.eq.s32.totalorder %s19, 0
      %p62 = por %p60, %p61
      %s64 = sadd.s32 %s63, 1
      %p67 = scmp.eq.s32.totalorder %s13, 1
      %p68 = scmp.ne.s32.totalorder %s63, %s65
      %p69 = scmp.eq.s32.totalorder %s13, 0
      %p70 = por %p68, %p69
      %p71 = scmp.ne.s32.totalorder %s63, %s65
      %p72 = scmp.eq.s32.totalorder %s18, 1
      %p73 = por %p71, %p72
      %p74 = scmp.ne.s32.totalorder %s65, %s66
      %p75 = scmp.eq.s32.totalorder %s18, 0
      %p76 = por %p74, %p75
      %p77 = scmp.ne.s32.totalorder %s65, %s66
      %p78 = scmp.eq.s32.totalorder %s19, 1
      %p79 = por %p77, %p78
      %p81 = scmp.ne.s32.totalorder %s66, %s80
      %p82 = scmp.eq.s32.totalorder %s19, 0
      %p83 = por %p81, %p82
      %s85 = sadd.s32 %s84, 1
      %p88 = scmp.eq.s32.totalorder %s13, 1
      %p89 = scmp.ne.s32.totalorder %s84, %s86
      %p90 = scmp.eq.s32.totalorder %s13, 0
      %p91 = por %p89, %p90
      %p92 = scmp.ne.s32.totalorder %s84, %s86
      %p93 = scmp.eq.s32.totalorder %s18, 1
      %p94 = por %p92, %p93
      %p95 = scmp.ne.s32.totalorder %s86, %s87
      %p96 = scmp.eq.s32.totalorder %s18, 0
      %p97 = por %p95, %p96
      %p98 = scmp.ne.s32.totalorder %s86, %s87
      %p99 = scmp.eq.s32.totalorder %s19, 1
      %p100 = por %p98, %p99
      %p102 = scmp.ne.s32.totalorder %s87, %s101
      %p103 = scmp.eq.s32.totalorder %s19, 0
      %p104 = por %p102, %p103
      %s106 = sadd.s32 %s105, 1
      %p109 = scmp.eq.s32.totalorder %s13, 1
      %p110 = scmp.ne.s32.totalorder %s105, %s107
      %p111 = scmp.eq.s32.totalorder %s13, 0
      %p112 = por %p110, %p111
      %p113 = scmp.ne.s32.totalorder %s105, %s107
      %p114 = scmp.eq.s32.totalorder %s18, 1
      %p115 = por %p113, %p114
      %p116 = scmp.ne.s32.totalorder %s107, %s108
      %p117 = scmp.eq.s32.totalorder %s18, 0
      %p118 = por %p116, %p117
      %p119 = scmp.ne.s32.totalorder %s107, %s108
      %p120 = scmp.eq.s32.totalorder %s19, 1
      %p121 = por %p119, %p120
      %p123 = scmp.ne.s32.totalorder %s108, %s122
      %p124 = scmp.eq.s32.totalorder %s19, 0
      %p125 = por %p123, %p124
      %p126 = scmp.le.s32.totalorder 1, %s13
      %p127 = scmp.lt.s32.totalorder %s13, 3
      %p128 = pnand %p126, %p127
      %p129 = pneg %p128
      // Predicated region
      $region9: #{tpu_custom_call.1} parent=5 // pred_check
        _
      $region10: #{tpu_custom_call.1} parent=5 // pred_check_branch
        %131 = sbr.rel (%p128) target = $region12
      $region11: #{tpu_custom_call.1} parent=5 // pred_region
        %s132 = ssub.s32 %s13, 1
        // Predicated region
        $region13: #{tpu_custom_call.1} parent=11 // pred_check
          %p133 = pneg %p34
        $region14: #{tpu_custom_call.1} parent=11 // pred_check_branch
          %135 = sbr.rel (%p133) target = $region16
        $region15: #{tpu_custom_call.1} parent=11 // pred_region
          %s137 = ssub.s32 4096, 4096
          %138 = vsyncadd [#allocation5], %s137
          %s139 = sshll.u32 [#allocation4], 4
          %s140 = int_to_ptr.vmem [resolvable:$true] %s139
          %145 = dma.hbm_to_vmem [thread:$0]  %s0, 4096, %s140, [#allocation5], 128, 128, 8
        $region16: #{tpu_custom_call.1} parent=11 // pred_fallthru
          _
        // Predicated region
        $region17: #{tpu_custom_call.1} parent=11 // pred_check
          %p146 = pneg %p55
        $region18: #{tpu_custom_call.1} parent=11 // pred_check_branch
          %148 = sbr.rel (%p146) target = $region20
        $region19: #{tpu_custom_call.1} parent=11 // pred_region
          %s150 = ssub.s32 2048, 2048
          %151 = vsyncadd [#allocation8], %s150
          %s152 = sshll.u32 [#allocation7], 4
          %s153 = int_to_ptr.vmem [resolvable:$true] %s152
          %158 = dma.hbm_to_vmem [thread:$0]  %s1, 2048, %s153, [#allocation8], 64, 64, 4
        $region20: #{tpu_custom_call.1} parent=11 // pred_fallthru
          _
        // Predicated region
        $region21: #{tpu_custom_call.1} parent=11 // pred_check
          %p159 = pneg %p76
        $region22: #{tpu_custom_call.1} parent=11 // pred_check_branch
          %161 = sbr.rel (%p159) target = $region24
        $region23: #{tpu_custom_call.1} parent=11 // pred_region
          %s163 = ssub.s32 1024, 1024
          %164 = vsyncadd [#allocation8], %s163
          %s165 = sshll.u32 [#allocation9], 4
          %s166 = int_to_ptr.vmem [resolvable:$true] %s165
          %171 = dma.hbm_to_vmem [thread:$0]  %s2, 1024, %s166, [#allocation8], 64, 64, 4
        $region24: #{tpu_custom_call.1} parent=11 // pred_fallthru
          _
        // Predicated region
        $region25: #{tpu_custom_call.1} parent=11 // pred_check
          %p172 = pneg %p97
        $region26: #{tpu_custom_call.1} parent=11 // pred_check_branch
          %174 = sbr.rel (%p172) target = $region28
        $region27: #{tpu_custom_call.1} parent=11 // pred_region
          _
        $region28: #{tpu_custom_call.1} parent=11 // pred_fallthru
          _
      $region12: #{tpu_custom_call.1} parent=5 // pred_fallthru
        _
      %p175 = scmp.lt.s32.totalorder %s13, 2
      // Predicated region
      $region29: #{tpu_custom_call.1} parent=5 // pred_check
        %p176 = pneg %p175
      $region30: #{tpu_custom_call.1} parent=5 // pred_check_branch
        %178 = sbr.rel (%p176) target = $region32
      $region31: #{tpu_custom_call.1} parent=5 // pred_region
        _
      $region32: #{tpu_custom_call.1} parent=5 // pred_fallthru
        _
      %p179 = scmp.le.s32.totalorder 1, %s13
      %p180 = scmp.lt.s32.totalorder %s13, 3
      %p181 = pnand %p179, %p180
      %p182 = pneg %p181
      // Predicated region
      $region33: #{tpu_custom_call.1} parent=5 // pred_check
        _
      $region34: #{tpu_custom_call.1} parent=5 // pred_check_branch
        %184 = sbr.rel (%p181) target = $region36
      $region35: #{tpu_custom_call.1} parent=5 // pred_region
        %s185 = ssub.s32 %s13, 1
        // Predicated region
        $region37: #{tpu_custom_call.1} parent=35 // pred_check
          %p186 = pneg %p34
        $region38: #{tpu_custom_call.1} parent=35 // pred_check_branch
          %188 = sbr.rel (%p186) target = $region40
        $region39: #{tpu_custom_call.1} parent=35 // pred_region
          %189 = dma.done [#allocation5], 4096
        $region40: #{tpu_custom_call.1} parent=35 // pred_fallthru
          _
        // Predicated region
        $region41: #{tpu_custom_call.1} parent=35 // pred_check
          %p190 = pneg %p55
        $region42: #{tpu_custom_call.1} parent=35 // pred_check_branch
          %192 = sbr.rel (%p190) target = $region44
        $region43: #{tpu_custom_call.1} parent=35 // pred_region
          %193 = dma.done [#allocation8], 2048
        $region44: #{tpu_custom_call.1} parent=35 // pred_fallthru
          _
        // Predicated region
        $region45: #{tpu_custom_call.1} parent=35 // pred_check
          %p194 = pneg %p76
        $region46: #{tpu_custom_call.1} parent=35 // pred_check_branch
          %196 = sbr.rel (%p194) target = $region48
        $region47: #{tpu_custom_call.1} parent=35 // pred_region
          %197 = dma.done [#allocation8], 1024
        $region48: #{tpu_custom_call.1} parent=35 // pred_fallthru
          _
        %p198 = pneg %p34
        %p199 = pneg %p31
        %p200 = pneg %p55
        %p201 = pneg %p52
        %p202 = pneg %p76
        %p203 = pneg %p73
        %p204 = pneg %p97
        %p205 = pneg %p94
        %p206 = pneg %p118
        %p207 = pneg %p115
        %p209 = scmp.eq.s32.totalorder %s18, 0
        // Predicated region
        $region49: #{tpu_custom_call.1} parent=35 // pred_check
          %p210 = pneg %p209
        $region50: #{tpu_custom_call.1} parent=35 // pred_check_branch
          %212 = sbr.rel (%p210) target = $region52
        $region51: #{tpu_custom_call.1} parent=35 // pred_region
          %v213 = vld [vmem:[#allocation7] sm:$0xf]
          %v214 = vld [vmem:[#allocation7 + $0x4] sm:$0xf]
          %v215 = vld [vmem:[#allocation7 + $0x8] sm:$0xf]
          %v216 = vld [vmem:[#allocation7 + $0xc] sm:$0xf]
          %v217 = vld [vmem:[#allocation7 + $0x10] sm:$0xf]
          %v218 = vld [vmem:[#allocation7 + $0x14] sm:$0xf]
          %v219 = vld [vmem:[#allocation7 + $0x18] sm:$0xf]
          %v220 = vld [vmem:[#allocation7 + $0x1c] sm:$0xf]
          %v221 = vld [vmem:[#allocation7 + $0x20] sm:$0xf]
          %v222 = vld [vmem:[#allocation7 + $0x24] sm:$0xf]
          %v223 = vld [vmem:[#allocation7 + $0x28] sm:$0xf]
          %v224 = vld [vmem:[#allocation7 + $0x2c] sm:$0xf]
          %v225 = vld [vmem:[#allocation7 + $0x30] sm:$0xf]
          %v226 = vld [vmem:[#allocation7 + $0x34] sm:$0xf]
          %v227 = vld [vmem:[#allocation7 + $0x38] sm:$0xf]
          %v228 = vld [vmem:[#allocation7 + $0x3c] sm:$0xf]
          %v229 = vld [vmem:[#allocation7 + $0x40] sm:$0xf]
          %v230 = vld [vmem:[#allocation7 + $0x44] sm:$0xf]
          %v231 = vld [vmem:[#allocation7 + $0x48] sm:$0xf]
          %v232 = vld [vmem:[#allocation7 + $0x4c] sm:$0xf]
          %v233 = vld [vmem:[#allocation7 + $0x50] sm:$0xf]
          %v234 = vld [vmem:[#allocation7 + $0x54] sm:$0xf]
          %v235 = vld [vmem:[#allocation7 + $0x58] sm:$0xf]
          %v236 = vld [vmem:[#allocation7 + $0x5c] sm:$0xf]
          %v237 = vld [vmem:[#allocation7 + $0x60] sm:$0xf]
          %v238 = vld [vmem:[#allocation7 + $0x64] sm:$0xf]
          %v239 = vld [vmem:[#allocation7 + $0x68] sm:$0xf]
          %v240 = vld [vmem:[#allocation7 + $0x6c] sm:$0xf]
          %v241 = vld [vmem:[#allocation7 + $0x70] sm:$0xf]
          %v242 = vld [vmem:[#allocation7 + $0x74] sm:$0xf]
          %v243 = vld [vmem:[#allocation7 + $0x78] sm:$0xf]
          %v244 = vld [vmem:[#allocation7 + $0x7c] sm:$0xf]
          %v245 = vunpack.c.l.bf16 %v213
          %v246 = vunpack.c.l.bf16 %v214
          %v247 = vunpack.c.l.bf16 %v215
          %v248 = vunpack.c.l.bf16 %v216
          %v249 = vunpack.c.l.bf16 %v217
          %v250 = vunpack.c.l.bf16 %v218
          %v251 = vunpack.c.l.bf16 %v219
          %v252 = vunpack.c.l.bf16 %v220
          %v253 = vunpack.c.l.bf16 %v221
          %v254 = vunpack.c.l.bf16 %v222
          %v255 = vunpack.c.l.bf16 %v223
          %v256 = vunpack.c.l.bf16 %v224
          %v257 = vunpack.c.l.bf16 %v225
          %v258 = vunpack.c.l.bf16 %v226
          %v259 = vunpack.c.l.bf16 %v227
          %v260 = vunpack.c.l.bf16 %v228
          %v261 = vunpack.c.l.bf16 %v229
          %v262 = vunpack.c.l.bf16 %v230
          %v263 = vunpack.c.l.bf16 %v231
          %v264 = vunpack.c.l.bf16 %v232
          %v265 = vunpack.c.l.bf16 %v233
          %v266 = vunpack.c.l.bf16 %v234
          %v267 = vunpack.c.l.bf16 %v235
          %v268 = vunpack.c.l.bf16 %v236
          %v269 = vunpack.c.l.bf16 %v237
          %v270 = vunpack.c.l.bf16 %v238
          %v271 = vunpack.c.l.bf16 %v239
          %v272 = vunpack.c.l.bf16 %v240
          %v273 = vunpack.c.l.bf16 %v241
          %v274 = vunpack.c.l.bf16 %v242
          %v275 = vunpack.c.l.bf16 %v243
          %v276 = vunpack.c.l.bf16 %v244
          %277 = vst [vmem:[#allocation2] sm:$0xff] %v245
          %278 = vst [vmem:[#allocation2 + $0x8] sm:$0xff] %v246
          %279 = vst [vmem:[#allocation2 + $0x10] sm:$0xff] %v247
          %280 = vst [vmem:[#allocation2 + $0x18] sm:$0xff] %v248
          %281 = vst [vmem:[#allocation2 + $0x20] sm:$0xff] %v249
          %282 = vst [vmem:[#allocation2 + $0x28] sm:$0xff] %v250
          %283 = vst [vmem:[#allocation2 + $0x30] sm:$0xff] %v251
          %284 = vst [vmem:[#allocation2 + $0x38] sm:$0xff] %v252
          %285 = vst [vmem:[#allocation2 + $0x40] sm:$0xff] %v253
          %286 = vst [vmem:[#allocation2 + $0x48] sm:$0xff] %v254
          %287 = vst [vmem:[#allocation2 + $0x50] sm:$0xff] %v255
          %288 = vst [vmem:[#allocation2 + $0x58] sm:$0xff] %v256
          %289 = vst [vmem:[#allocation2 + $0x60] sm:$0xff] %v257
          %290 = vst [vmem:[#allocation2 + $0x68] sm:$0xff] %v258
          %291 = vst [vmem:[#allocation2 + $0x70] sm:$0xff] %v259
          %292 = vst [vmem:[#allocation2 + $0x78] sm:$0xff] %v260
          %293 = vst [vmem:[#allocation2 + $0x80] sm:$0xff] %v261
          %294 = vst [vmem:[#allocation2 + $0x88] sm:$0xff] %v262
          %295 = vst [vmem:[#allocation2 + $0x90] sm:$0xff] %v263
          %296 = vst [vmem:[#allocation2 + $0x98] sm:$0xff] %v264
          %297 = vst [vmem:[#allocation2 + $0xa0] sm:$0xff] %v265
          %298 = vst [vmem:[#allocation2 + $0xa8] sm:$0xff] %v266
          %299 = vst [vmem:[#allocation2 + $0xb0] sm:$0xff] %v267
          %300 = vst [vmem:[#allocation2 + $0xb8] sm:$0xff] %v268
          %301 = vst [vmem:[#allocation2 + $0xc0] sm:$0xff] %v269
          %302 = vst [vmem:[#allocation2 + $0xc8] sm:$0xff] %v270
          %303 = vst [vmem:[#allocation2 + $0xd0] sm:$0xff] %v271
          %304 = vst [vmem:[#allocation2 + $0xd8] sm:$0xff] %v272
          %305 = vst [vmem:[#allocation2 + $0xe0] sm:$0xff] %v273
          %306 = vst [vmem:[#allocation2 + $0xe8] sm:$0xff] %v274
          %307 = vst [vmem:[#allocation2 + $0xf0] sm:$0xff] %v275
          %308 = vst [vmem:[#allocation2 + $0xf8] sm:$0xff] %v276
        $region52: #{tpu_custom_call.1} parent=35 // pred_fallthru
          _
        %p309 = scmp.lt.s32.totalorder %s18, 0
        %s310 = ssub.s32 0, %s18
        %s311 = scalar_select %p309, %s310, %s18
        %s312 = sand.u32 %s311, 1
        %s313 = ssub.s32 0, %s312
        %s314 = scalar_select %p309, %s313, %s312
        %p315 = scmp.eq.s32.totalorder %s314, 0
        // Predicated region
        $region53: #{tpu_custom_call.1} parent=35 // pred_check
          %p316 = pneg %p315
        $region54: #{tpu_custom_call.1} parent=35 // pred_check_branch
          %318 = sbr.rel (%p316) target = $region56
        $region55: #{tpu_custom_call.1} parent=35 // pred_region
          %v319 = vld [vmem:[#allocation4] sm:$0xff]
          %v320 = vld [vmem:[#allocation4 + $0x8] sm:$0xff]
          %v321 = vld [vmem:[#allocation4 + $0x10] sm:$0xff]
          %v322 = vld [vmem:[#allocation4 + $0x18] sm:$0xff]
          %v323 = vld [vmem:[#allocation4 + $0x20] sm:$0xff]
          %v324 = vld [vmem:[#allocation4 + $0x28] sm:$0xff]
          %v325 = vld [vmem:[#allocation4 + $0x30] sm:$0xff]
          %v326 = vld [vmem:[#allocation4 + $0x38] sm:$0xff]
          %v327 = vld [vmem:[#allocation4 + $0x40] sm:$0xff]
          %v328 = vld [vmem:[#allocation4 + $0x48] sm:$0xff]
          %v329 = vld [vmem:[#allocation4 + $0x50] sm:$0xff]
          %v330 = vld [vmem:[#allocation4 + $0x58] sm:$0xff]
          %v331 = vld [vmem:[#allocation4 + $0x60] sm:$0xff]
          %v332 = vld [vmem:[#allocation4 + $0x68] sm:$0xff]
          %v333 = vld [vmem:[#allocation4 + $0x70] sm:$0xff]
          %v334 = vld [vmem:[#allocation4 + $0x78] sm:$0xff]
          %v335 = vld [vmem:[#allocation4 + $0x80] sm:$0xff]
          %v336 = vld [vmem:[#allocation4 + $0x88] sm:$0xff]
          %v337 = vld [vmem:[#allocation4 + $0x90] sm:$0xff]
          %v338 = vld [vmem:[#allocation4 + $0x98] sm:$0xff]
          %v339 = vld [vmem:[#allocation4 + $0xa0] sm:$0xff]
          %v340 = vld [vmem:[#allocation4 + $0xa8] sm:$0xff]
          %v341 = vld [vmem:[#allocation4 + $0xb0] sm:$0xff]
          %v342 = vld [vmem:[#allocation4 + $0xb8] sm:$0xff]
          %v343 = vld [vmem:[#allocation4 + $0xc0] sm:$0xff]
          %v344 = vld [vmem:[#allocation4 + $0xc8] sm:$0xff]
          %v345 = vld [vmem:[#allocation4 + $0xd0] sm:$0xff]
          %v346 = vld [vmem:[#allocation4 + $0xd8] sm:$0xff]
          %v347 = vld [vmem:[#allocation4 + $0xe0] sm:$0xff]
          %v348 = vld [vmem:[#allocation4 + $0xe8] sm:$0xff]
          %v349 = vld [vmem:[#allocation4 + $0xf0] sm:$0xff]
          %v350 = vld [vmem:[#allocation4 + $0xf8] sm:$0xff]
          %v351 = vld [vmem:[#allocation2] sm:$0xff]
          %v352 = vld [vmem:[#allocation2 + $0x8] sm:$0xff]
          %v353 = vld [vmem:[#allocation2 + $0x10] sm:$0xff]
          %v354 = vld [vmem:[#allocation2 + $0x18] sm:$0xff]
          %v355 = vld [vmem:[#allocation2 + $0x20] sm:$0xff]
          %v356 = vld [vmem:[#allocation2 + $0x28] sm:$0xff]
          %v357 = vld [vmem:[#allocation2 + $0x30] sm:$0xff]
          %v358 = vld [vmem:[#allocation2 + $0x38] sm:$0xff]
          %v359 = vld [vmem:[#allocation2 + $0x40] sm:$0xff]
          %v360 = vld [vmem:[#allocation2 + $0x48] sm:$0xff]
          %v361 = vld [vmem:[#allocation2 + $0x50] sm:$0xff]
          %v362 = vld [vmem:[#allocation2 + $0x58] sm:$0xff]
          %v363 = vld [vmem:[#allocation2 + $0x60] sm:$0xff]
          %v364 = vld [vmem:[#allocation2 + $0x68] sm:$0xff]
          %v365 = vld [vmem:[#allocation2 + $0x70] sm:$0xff]
          %v366 = vld [vmem:[#allocation2 + $0x78] sm:$0xff]
          %v367 = vld [vmem:[#allocation2 + $0x80] sm:$0xff]
          %v368 = vld [vmem:[#allocation2 + $0x88] sm:$0xff]
          %v369 = vld [vmem:[#allocation2 + $0x90] sm:$0xff]
          %v370 = vld [vmem:[#allocation2 + $0x98] sm:$0xff]
          %v371 = vld [vmem:[#allocation2 + $0xa0] sm:$0xff]
          %v372 = vld [vmem:[#allocation2 + $0xa8] sm:$0xff]
          %v373 = vld [vmem:[#allocation2 + $0xb0] sm:$0xff]
          %v374 = vld [vmem:[#allocation2 + $0xb8] sm:$0xff]
          %v375 = vld [vmem:[#allocation2 + $0xc0] sm:$0xff]
          %v376 = vld [vmem:[#allocation2 + $0xc8] sm:$0xff]
          %v377 = vld [vmem:[#allocation2 + $0xd0] sm:$0xff]
          %v378 = vld [vmem:[#allocation2 + $0xd8] sm:$0xff]
          %v379 = vld [vmem:[#allocation2 + $0xe0] sm:$0xff]
          %v380 = vld [vmem:[#allocation2 + $0xe8] sm:$0xff]
          %v381 = vld [vmem:[#allocation2 + $0xf0] sm:$0xff]
          %v382 = vld [vmem:[#allocation2 + $0xf8] sm:$0xff]
          %v383 = vpack.c.bf16 %v352, %v351
          %v384 = vpack.c.bf16 %v354, %v353
          %v385 = vpack.c.bf16 %v356, %v355
          %v386 = vpack.c.bf16 %v358, %v357
          %v387 = vpack.c.bf16 %v360, %v359
          %v388 = vpack.c.bf16 %v362, %v361
          %v389 = vpack.c.bf16 %v364, %v363
          %v390 = vpack.c.bf16 %v366, %v365
          %v391 = vpack.c.bf16 %v368, %v367
          %v392 = vpack.c.bf16 %v370, %v369
          %v393 = vpack.c.bf16 %v372, %v371
          %v394 = vpack.c.bf16 %v374, %v373
          %v395 = vpack.c.bf16 %v376, %v375
          %v396 = vpack.c.bf16 %v378, %v377
          %v397 = vpack.c.bf16 %v380, %v379
          %v398 = vpack.c.bf16 %v382, %v381
          %v431 = vunpack.c.l.b16 %v319
          %v432 = vunpack.c.h.b16 %v319
          %v433 = vunpack.c.l.b16 %v320
          %v434 = vunpack.c.h.b16 %v320
          %v435 = vunpack.c.l.b16 %v321
          %v436 = vunpack.c.h.b16 %v321
          %v437 = vunpack.c.l.b16 %v322
          %v438 = vunpack.c.h.b16 %v322
          %v439 = vunpack.c.l.b16 %v323
          %v440 = vunpack.c.h.b16 %v323
          %v441 = vunpack.c.l.b16 %v324
          %v442 = vunpack.c.h.b16 %v324
          %v443 = vunpack.c.l.b16 %v325
          %v444 = vunpack.c.h.b16 %v325
          %v445 = vunpack.c.l.b16 %v326
          %v446 = vunpack.c.h.b16 %v326
          %v447 = vunpack.c.l.b16 %v327
          %v448 = vunpack.c.h.b16 %v327
          %v449 = vunpack.c.l.b16 %v328
          %v450 = vunpack.c.h.b16 %v328
          %v451 = vunpack.c.l.b16 %v329
          %v452 = vunpack.c.h.b16 %v329
          %v453 = vunpack.c.l.b16 %v330
          %v454 = vunpack.c.h.b16 %v330
          %v455 = vunpack.c.l.b16 %v331
          %v456 = vunpack.c.h.b16 %v331
          %v457 = vunpack.c.l.b16 %v332
          %v458 = vunpack.c.h.b16 %v332
          %v459 = vunpack.c.l.b16 %v333
          %v460 = vunpack.c.h.b16 %v333
          %v461 = vunpack.c.l.b16 %v334
          %v462 = vunpack.c.h.b16 %v334
          %v463 = vunpack.c.l.b16 %v335
          %v464 = vunpack.c.h.b16 %v335
          %v465 = vunpack.c.l.b16 %v336
          %v466 = vunpack.c.h.b16 %v336
          %v467 = vunpack.c.l.b16 %v337
          %v468 = vunpack.c.h.b16 %v337
          %v469 = vunpack.c.l.b16 %v338
          %v470 = vunpack.c.h.b16 %v338
          %v471 = vunpack.c.l.b16 %v339
          %v472 = vunpack.c.h.b16 %v339
          %v473 = vunpack.c.l.b16 %v340
          %v474 = vunpack.c.h.b16 %v340
          %v475 = vunpack.c.l.b16 %v341
          %v476 = vunpack.c.h.b16 %v341
          %v477 = vunpack.c.l.b16 %v342
          %v478 = vunpack.c.h.b16 %v342
          %v479 = vunpack.c.l.b16 %v343
          %v480 = vunpack.c.h.b16 %v343
          %v481 = vunpack.c.l.b16 %v344
          %v482 = vunpack.c.h.b16 %v344
          %v483 = vunpack.c.l.b16 %v345
          %v484 = vunpack.c.h.b16 %v345
          %v485 = vunpack.c.l.b16 %v346
          %v486 = vunpack.c.h.b16 %v346
          %v487 = vunpack.c.l.b16 %v347
          %v488 = vunpack.c.h.b16 %v347
          %v489 = vunpack.c.l.b16 %v348
          %v490 = vunpack.c.h.b16 %v348
          %v491 = vunpack.c.l.b16 %v349
          %v492 = vunpack.c.h.b16 %v349
          %v493 = vunpack.c.l.b16 %v350
          %v494 = vunpack.c.h.b16 %v350
          %v495 = vpack.c.b16 %v433, %v431
          %v496 = vpack.c.b16 %v434, %v432
          %v497 = vpack.c.b16 %v437, %v435
          %v498 = vpack.c.b16 %v438, %v436
          %v499 = vpack.c.b16 %v441, %v439
          %v500 = vpack.c.b16 %v442, %v440
          %v501 = vpack.c.b16 %v445, %v443
          %v502 = vpack.c.b16 %v446, %v444
          %v503 = vpack.c.b16 %v449, %v447
          %v504 = vpack.c.b16 %v450, %v448
          %v505 = vpack.c.b16 %v453, %v451
          %v506 = vpack.c.b16 %v454, %v452
          %v507 = vpack.c.b16 %v457, %v455
          %v508 = vpack.c.b16 %v458, %v456
          %v509 = vpack.c.b16 %v461, %v459
          %v510 = vpack.c.b16 %v462, %v460
          %v511 = vpack.c.b16 %v465, %v463
          %v512 = vpack.c.b16 %v466, %v464
          %v513 = vpack.c.b16 %v469, %v467
          %v514 = vpack.c.b16 %v470, %v468
          %v515 = vpack.c.b16 %v473, %v471
          %v516 = vpack.c.b16 %v474, %v472
          %v517 = vpack.c.b16 %v477, %v475
          %v518 = vpack.c.b16 %v478, %v476
          %v519 = vpack.c.b16 %v481, %v479
          %v520 = vpack.c.b16 %v482, %v480
          %v521 = vpack.c.b16 %v485, %v483
          %v522 = vpack.c.b16 %v486, %v484
          %v523 = vpack.c.b16 %v489, %v487
          %v524 = vpack.c.b16 %v490, %v488
          %v525 = vpack.c.b16 %v493, %v491
          %v526 = vpack.c.b16 %v494, %v492
          %559 = vmatprep.subr.bf16.mxu0 0
          %560 = vmatpush1.bf16.msra.mxu0 %v383
          %561 = vmatprep.subr.bf16.mxu0 0
          %562 = vmatpush1.bf16.msra.mxu0 %v384
          %563 = vmatprep.subr.bf16.mxu0 0
          %564 = vmatpush1.bf16.msra.mxu0 %v385
          %565 = vmatprep.subr.bf16.mxu0 0
          %566 = vmatpush1.bf16.msra.mxu0 %v386
          %567 = vmatprep.subr.bf16.mxu0 0
          %568 = vmatpush1.bf16.msra.mxu0 %v387
          %569 = vmatprep.subr.bf16.mxu0 0
          %570 = vmatpush1.bf16.msra.mxu0 %v388
          %571 = vmatprep.subr.bf16.mxu0 0
          %572 = vmatpush1.bf16.msra.mxu0 %v389
          %573 = vmatprep.subr.bf16.mxu0 0
          %574 = vmatpush1.bf16.msra.mxu0 %v390
          %575 = vmatprep.subr.bf16.mxu0 0
          %576 = vmatpush1.bf16.msra.mxu0 %v391
          %577 = vmatprep.subr.bf16.mxu0 0
          %578 = vmatpush1.bf16.msra.mxu0 %v392
          %579 = vmatprep.subr.bf16.mxu0 0
          %580 = vmatpush1.bf16.msra.mxu0 %v393
          %581 = vmatprep.subr.bf16.mxu0 0
          %582 = vmatpush1.bf16.msra.mxu0 %v394
          %583 = vmatprep.subr.bf16.mxu0 0
          %584 = vmatpush1.bf16.msra.mxu0 %v395
          %585 = vmatprep.subr.bf16.mxu0 0
          %586 = vmatpush1.bf16.msra.mxu0 %v396
          %587 = vmatprep.subr.bf16.mxu0 0
          %588 = vmatpush1.bf16.msra.mxu0 %v397
          %589 = vmatprep.subr.bf16.mxu0 0
          %590 = vmatpush1.bf16.msra.mxu0 %v398
          %591 = vmatprep.mubr.bf16.mxu0 %v496
          %592 = vmatmul.mubr.bf16.gmra.mrb[0].mxu0 %v495
          %v593 = vpop.f32.mrb[0].mxu0
          %v594 = vadd.f32 0.0, %v593
          %v595 = vpop.f32.mrb[0].mxu0
          %v596 = vpop.f32.mrb[0].mxu0
          %v597 = vadd.f32 0.0, %v596
          %v598 = vpop.f32.mrb[0].mxu0
          %599 = vmatprep.mubr.bf16.mxu0 %v498
          %600 = vmatmul.mubr.bf16.gmra.mrb[0].mxu0 %v497
          %v601 = vpop.f32.mrb[0].mxu0
          %v602 = vadd.f32 0.0, %v601
          %v603 = vpop.f32.mrb[0].mxu0
          %v604 = vpop.f32.mrb[0].mxu0
          %v605 = vadd.f32 0.0, %v604
          %v606 = vpop.f32.mrb[0].mxu0
          %607 = vmatprep.mubr.bf16.mxu0 %v500
          %608 = vmatmul.mubr.bf16.gmra.mrb[0].mxu0 %v499
          %v609 = vpop.f32.mrb[0].mxu0
          %v610 = vadd.f32 0.0, %v609
          %v611 = vpop.f32.mrb[0].mxu0
          %v612 = vpop.f32.mrb[0].mxu0
          %v613 = vadd.f32 0.0, %v612
          %v614 = vpop.f32.mrb[0].mxu0
          %615 = vmatprep.mubr.bf16.mxu0 %v502
          %616 = vmatmul.mubr.bf16.gmra.mrb[0].mxu0 %v501
          %v617 = vpop.f32.mrb[0].mxu0
          %v618 = vadd.f32 0.0, %v617
          %v619 = vpop.f32.mrb[0].mxu0
          %v620 = vpop.f32.mrb[0].mxu0
          %v621 = vadd.f32 0.0, %v620
          %v622 = vpop.f32.mrb[0].mxu0
          %623 = vmatprep.mubr.bf16.mxu0 %v504
          %624 = vmatmul.mubr.bf16.gmra.mrb[0].mxu0 %v503
          %v625 = vpop.f32.mrb[0].mxu0
          %v626 = vadd.f32 0.0, %v625
          %v627 = vpop.f32.mrb[0].mxu0
          %v628 = vpop.f32.mrb[0].mxu0
          %v629 = vadd.f32 0.0, %v628
          %v630 = vpop.f32.mrb[0].mxu0
          %631 = vmatprep.mubr.bf16.mxu0 %v506
          %632 = vmatmul.mubr.bf16.gmra.mrb[0].mxu0 %v505
          %v633 = vpop.f32.mrb[0].mxu0
          %v634 = vadd.f32 0.0, %v633
          %v635 = vpop.f32.mrb[0].mxu0
          %v636 = vpop.f32.mrb[0].mxu0
          %v637 = vadd.f32 0.0, %v636
          %v638 = vpop.f32.mrb[0].mxu0
          %639 = vmatprep.mubr.bf16.mxu0 %v508
          %640 = vmatmul.mubr.bf16.gmra.mrb[0].mxu0 %v507
          %v641 = vpop.f32.mrb[0].mxu0
          %v642 = vadd.f32 0.0, %v641
          %v643 = vpop.f32.mrb[0].mxu0
          %v644 = vpop.f32.mrb[0].mxu0
          %v645 = vadd.f32 0.0, %v644
          %v646 = vpop.f32.mrb[0].mxu0
          %647 = vmatprep.mubr.bf16.mxu0 %v510
          %648 = vmatmul.mubr.bf16.gmra.mrb[0].mxu0 %v509
          %v649 = vpop.f32.mrb[0].mxu0
          %v650 = vadd.f32 0.0, %v649
          %v651 = vpop.f32.mrb[0].mxu0
          %v652 = vpop.f32.mrb[0].mxu0
          %v653 = vadd.f32 0.0, %v652
          %v654 = vpop.f32.mrb[0].mxu0
          %655 = vmatprep.mubr.bf16.mxu0 %v512
          %656 = vmatmul.mubr.bf16.gmra.mrb[0].mxu0 %v511
          %v657 = vpop.f32.mrb[0].mxu0
          %v658 = vadd.f32 0.0, %v657
          %v659 = vpop.f32.mrb[0].mxu0
          %v660 = vpop.f32.mrb[0].mxu0
          %v661 = vadd.f32 0.0, %v660
          %v662 = vpop.f32.mrb[0].mxu0
          %663 = vmatprep.mubr.bf16.mxu0 %v514
          %664 = vmatmul.mubr.bf16.gmra.mrb[0].mxu0 %v513
          %v665 = vpop.f32.mrb[0].mxu0
          %v666 = vadd.f32 0.0, %v665
          %v667 = vpop.f32.mrb[0].mxu0
          %v668 = vpop.f32.mrb[0].mxu0
          %v669 = vadd.f32 0.0, %v668
          %v670 = vpop.f32.mrb[0].mxu0
          %671 = vmatprep.mubr.bf16.mxu0 %v516
          %672 = vmatmul.mubr.bf16.gmra.mrb[0].mxu0 %v515
          %v673 = vpop.f32.mrb[0].mxu0
          %v674 = vadd.f32 0.0, %v673
          %v675 = vpop.f32.mrb[0].mxu0
          %v676 = vpop.f32.mrb[0].mxu0
          %v677 = vadd.f32 0.0, %v676
          %v678 = vpop.f32.mrb[0].mxu0
          %679 = vmatprep.mubr.bf16.mxu0 %v518
          %680 = vmatmul.mubr.bf16.gmra.mrb[0].mxu0 %v517
          %v681 = vpop.f32.mrb[0].mxu0
          %v682 = vadd.f32 0.0, %v681
          %v683 = vpop.f32.mrb[0].mxu0
          %v684 = vpop.f32.mrb[0].mxu0
          %v685 = vadd.f32 0.0, %v684
          %v686 = vpop.f32.mrb[0].mxu0
          %687 = vmatprep.mubr.bf16.mxu0 %v520
          %688 = vmatmul.mubr.bf16.gmra.mrb[0].mxu0 %v519
          %v689 = vpop.f32.mrb[0].mxu0
          %v690 = vadd.f32 0.0, %v689
          %v691 = vpop.f32.mrb[0].mxu0
          %v692 = vpop.f32.mrb[0].mxu0
          %v693 = vadd.f32 0.0, %v692
          %v694 = vpop.f32.mrb[0].mxu0
          %695 = vmatprep.mubr.bf16.mxu0 %v522
          %696 = vmatmul.mubr.bf16.gmra.mrb[0].mxu0 %v521
          %v697 = vpop.f32.mrb[0].mxu0
          %v698 = vadd.f32 0.0, %v697
          %v699 = vpop.f32.mrb[0].mxu0
          %v700 = vpop.f32.mrb[0].mxu0
          %v701 = vadd.f32 0.0, %v700
          %v702 = vpop.f32.mrb[0].mxu0
          %703 = vmatprep.mubr.bf16.mxu0 %v524
          %704 = vmatmul.mubr.bf16.gmra.mrb[0].mxu0 %v523
          %v705 = vpop.f32.mrb[0].mxu0
          %v706 = vadd.f32 0.0, %v705
          %v707 = vpop.f32.mrb[0].mxu0
          %v708 = vpop.f32.mrb[0].mxu0
          %v709 = vadd.f32 0.0, %v708
          %v710 = vpop.f32.mrb[0].mxu0
          %711 = vmatprep.mubr.bf16.mxu0 %v526
          %712 = vmatmul.mubr.bf16.gmra.mrb[0].mxu0 %v525
          %v713 = vpop.f32.mrb[0].mxu0
          %v714 = vadd.f32 0.0, %v713
          %v715 = vpop.f32.mrb[0].mxu0
          %v716 = vpop.f32.mrb[0].mxu0
          %v717 = vadd.f32 0.0, %v716
          %v718 = vpop.f32.mrb[0].mxu0
          %719 = vdwg.mxu0
          %720 = vst [vmem:[#allocation3] sm:$0xff] %v594
          %721 = vst [vmem:[#allocation3 + $0x8] sm:$0xff] %v597
          %722 = vst [vmem:[#allocation3 + $0x10] sm:$0xff] %v602
          %723 = vst [vmem:[#allocation3 + $0x18] sm:$0xff] %v605
          %724 = vst [vmem:[#allocation3 + $0x20] sm:$0xff] %v610
          %725 = vst [vmem:[#allocation3 + $0x28] sm:$0xff] %v613
          %726 = vst [vmem:[#allocation3 + $0x30] sm:$0xff] %v618
          %727 = vst [vmem:[#allocation3 + $0x38] sm:$0xff] %v621
          %728 = vst [vmem:[#allocation3 + $0x40] sm:$0xff] %v626
          %729 = vst [vmem:[#allocation3 + $0x48] sm:$0xff] %v629
          %730 = vst [vmem:[#allocation3 + $0x50] sm:$0xff] %v634
          %731 = vst [vmem:[#allocation3 + $0x58] sm:$0xff] %v637
          %732 = vst [vmem:[#allocation3 + $0x60] sm:$0xff] %v642
          %733 = vst [vmem:[#allocation3 + $0x68] sm:$0xff] %v645
          %734 = vst [vmem:[#allocation3 + $0x70] sm:$0xff] %v650
          %735 = vst [vmem:[#allocation3 + $0x78] sm:$0xff] %v653
          %736 = vst [vmem:[#allocation3 + $0x80] sm:$0xff] %v658
          %737 = vst [vmem:[#allocation3 + $0x88] sm:$0xff] %v661
          %738 = vst [vmem:[#allocation3 + $0x90] sm:$0xff] %v666
          %739 = vst [vmem:[#allocation3 + $0x98] sm:$0xff] %v669
          %740 = vst [vmem:[#allocation3 + $0xa0] sm:$0xff] %v674
          %741 = vst [vmem:[#allocation3 + $0xa8] sm:$0xff] %v677
          %742 = vst [vmem:[#allocation3 + $0xb0] sm:$0xff] %v682
          %743 = vst [vmem:[#allocation3 + $0xb8] sm:$0xff] %v685
          %744 = vst [vmem:[#allocation3 + $0xc0] sm:$0xff] %v690
          %745 = vst [vmem:[#allocation3 + $0xc8] sm:$0xff] %v693
          %746 = vst [vmem:[#allocation3 + $0xd0] sm:$0xff] %v698
          %747 = vst [vmem:[#allocation3 + $0xd8] sm:$0xff] %v701
          %748 = vst [vmem:[#allocation3 + $0xe0] sm:$0xff] %v706
          %749 = vst [vmem:[#allocation3 + $0xe8] sm:$0xff] %v709
          %750 = vst [vmem:[#allocation3 + $0xf0] sm:$0xff] %v714
          %751 = vst [vmem:[#allocation3 + $0xf8] sm:$0xff] %v717
        $region56: #{tpu_custom_call.1} parent=35 // pred_fallthru
          _
        %p752 = scmp.ne.s32.totalorder %s314, 0
        // Predicated region
        $region57: #{tpu_custom_call.1} parent=35 // pred_check
          %p753 = pneg %p752
        $region58: #{tpu_custom_call.1} parent=35 // pred_check_branch
          %755 = sbr.rel (%p753) target = $region60
        $region59: #{tpu_custom_call.1} parent=35 // pred_region
          %v756 = vld [vmem:[#allocation4] sm:$0xff]
          %v757 = vld [vmem:[#allocation4 + $0x8] sm:$0xff]
          %v758 = vld [vmem:[#allocation4 + $0x10] sm:$0xff]
          %v759 = vld [vmem:[#allocation4 + $0x18] sm:$0xff]
          %v760 = vld [vmem:[#allocation4 + $0x20] sm:$0xff]
          %v761 = vld [vmem:[#allocation4 + $0x28] sm:$0xff]
          %v762 = vld [vmem:[#allocation4 + $0x30] sm:$0xff]
          %v763 = vld [vmem:[#allocation4 + $0x38] sm:$0xff]
          %v764 = vld [vmem:[#allocation4 + $0x40] sm:$0xff]
          %v765 = vld [vmem:[#allocation4 + $0x48] sm:$0xff]
          %v766 = vld [vmem:[#allocation4 + $0x50] sm:$0xff]
          %v767 = vld [vmem:[#allocation4 + $0x58] sm:$0xff]
          %v768 = vld [vmem:[#allocation4 + $0x60] sm:$0xff]
          %v769 = vld [vmem:[#allocation4 + $0x68] sm:$0xff]
          %v770 = vld [vmem:[#allocation4 + $0x70] sm:$0xff]
          %v771 = vld [vmem:[#allocation4 + $0x78] sm:$0xff]
          %v772 = vld [vmem:[#allocation4 + $0x80] sm:$0xff]
          %v773 = vld [vmem:[#allocation4 + $0x88] sm:$0xff]
          %v774 = vld [vmem:[#allocation4 + $0x90] sm:$0xff]
          %v775 = vld [vmem:[#allocation4 + $0x98] sm:$0xff]
          %v776 = vld [vmem:[#allocation4 + $0xa0] sm:$0xff]
          %v777 = vld [vmem:[#allocation4 + $0xa8] sm:$0xff]
          %v778 = vld [vmem:[#allocation4 + $0xb0] sm:$0xff]
          %v779 = vld [vmem:[#allocation4 + $0xb8] sm:$0xff]
          %v780 = vld [vmem:[#allocation4 + $0xc0] sm:$0xff]
          %v781 = vld [vmem:[#allocation4 + $0xc8] sm:$0xff]
          %v782 = vld [vmem:[#allocation4 + $0xd0] sm:$0xff]
          %v783 = vld [vmem:[#allocation4 + $0xd8] sm:$0xff]
          %v784 = vld [vmem:[#allocation4 + $0xe0] sm:$0xff]
          %v785 = vld [vmem:[#allocation4 + $0xe8] sm:$0xff]
          %v786 = vld [vmem:[#allocation4 + $0xf0] sm:$0xff]
          %v787 = vld [vmem:[#allocation4 + $0xf8] sm:$0xff]
          %v788 = vld [vmem:[#allocation3] sm:$0xff]
          %v789 = vld [vmem:[#allocation3 + $0x8] sm:$0xff]
          %v790 = vld [vmem:[#allocation3 + $0x10] sm:$0xff]
          %v791 = vld [vmem:[#allocation3 + $0x18] sm:$0xff]
          %v792 = vld [vmem:[#allocation3 + $0x20] sm:$0xff]
          %v793 = vld [vmem:[#allocation3 + $0x28] sm:$0xff]
          %v794 = vld [vmem:[#allocation3 + $0x30] sm:$0xff]
          %v795 = vld [vmem:[#allocation3 + $0x38] sm:$0xff]
          %v796 = vld [vmem:[#allocation3 + $0x40] sm:$0xff]
          %v797 = vld [vmem:[#allocation3 + $0x48] sm:$0xff]
          %v798 = vld [vmem:[#allocation3 + $0x50] sm:$0xff]
          %v799 = vld [vmem:[#allocation3 + $0x58] sm:$0xff]
          %v800 = vld [vmem:[#allocation3 + $0x60] sm:$0xff]
          %v801 = vld [vmem:[#allocation3 + $0x68] sm:$0xff]
          %v802 = vld [vmem:[#allocation3 + $0x70] sm:$0xff]
          %v803 = vld [vmem:[#allocation3 + $0x78] sm:$0xff]
          %v804 = vld [vmem:[#allocation3 + $0x80] sm:$0xff]
          %v805 = vld [vmem:[#allocation3 + $0x88] sm:$0xff]
          %v806 = vld [vmem:[#allocation3 + $0x90] sm:$0xff]
          %v807 = vld [vmem:[#allocation3 + $0x98] sm:$0xff]
          %v808 = vld [vmem:[#allocation3 + $0xa0] sm:$0xff]
          %v809 = vld [vmem:[#allocation3 + $0xa8] sm:$0xff]
          %v810 = vld [vmem:[#allocation3 + $0xb0] sm:$0xff]
          %v811 = vld [vmem:[#allocation3 + $0xb8] sm:$0xff]
          %v812 = vld [vmem:[#allocation3 + $0xc0] sm:$0xff]
          %v813 = vld [vmem:[#allocation3 + $0xc8] sm:$0xff]
          %v814 = vld [vmem:[#allocation3 + $0xd0] sm:$0xff]
          %v815 = vld [vmem:[#allocation3 + $0xd8] sm:$0xff]
          %v816 = vld [vmem:[#allocation3 + $0xe0] sm:$0xff]
          %v817 = vld [vmem:[#allocation3 + $0xe8] sm:$0xff]
          %v818 = vld [vmem:[#allocation3 + $0xf0] sm:$0xff]
          %v819 = vld [vmem:[#allocation3 + $0xf8] sm:$0xff]
          %v820 = vpack.c.bf16 %v789, %v788
          %v821 = vpack.c.bf16 %v791, %v790
          %v822 = vpack.c.bf16 %v793, %v792
          %v823 = vpack.c.bf16 %v795, %v794
          %v824 = vpack.c.bf16 %v797, %v796
          %v825 = vpack.c.bf16 %v799, %v798
          %v826 = vpack.c.bf16 %v801, %v800
          %v827 = vpack.c.bf16 %v803, %v802
          %v828 = vpack.c.bf16 %v805, %v804
          %v829 = vpack.c.bf16 %v807, %v806
          %v830 = vpack.c.bf16 %v809, %v808
          %v831 = vpack.c.bf16 %v811, %v810
          %v832 = vpack.c.bf16 %v813, %v812
          %v833 = vpack.c.bf16 %v815, %v814
          %v834 = vpack.c.bf16 %v817, %v816
          %v835 = vpack.c.bf16 %v819, %v818
          %v868 = vunpack.c.l.b16 %v756
          %v869 = vunpack.c.h.b16 %v756
          %v870 = vunpack.c.l.b16 %v757
          %v871 = vunpack.c.h.b16 %v757
          %v872 = vunpack.c.l.b16 %v758
          %v873 = vunpack.c.h.b16 %v758
          %v874 = vunpack.c.l.b16 %v759
          %v875 = vunpack.c.h.b16 %v759
          %v876 = vunpack.c.l.b16 %v760
          %v877 = vunpack.c.h.b16 %v760
          %v878 = vunpack.c.l.b16 %v761
          %v879 = vunpack.c.h.b16 %v761
          %v880 = vunpack.c.l.b16 %v762
          %v881 = vunpack.c.h.b16 %v762
          %v882 = vunpack.c.l.b16 %v763
          %v883 = vunpack.c.h.b16 %v763
          %v884 = vunpack.c.l.b16 %v764
          %v885 = vunpack.c.h.b16 %v764
          %v886 = vunpack.c.l.b16 %v765
          %v887 = vunpack.c.h.b16 %v765
          %v888 = vunpack.c.l.b16 %v766
          %v889 = vunpack.c.h.b16 %v766
          %v890 = vunpack.c.l.b16 %v767
          %v891 = vunpack.c.h.b16 %v767
          %v892 = vunpack.c.l.b16 %v768
          %v893 = vunpack.c.h.b16 %v768
          %v894 = vunpack.c.l.b16 %v769
          %v895 = vunpack.c.h.b16 %v769
          %v896 = vunpack.c.l.b16 %v770
          %v897 = vunpack.c.h.b16 %v770
          %v898 = vunpack.c.l.b16 %v771
          %v899 = vunpack.c.h.b16 %v771
          %v900 = vunpack.c.l.b16 %v772
          %v901 = vunpack.c.h.b16 %v772
          %v902 = vunpack.c.l.b16 %v773
          %v903 = vunpack.c.h.b16 %v773
          %v904 = vunpack.c.l.b16 %v774
          %v905 = vunpack.c.h.b16 %v774
          %v906 = vunpack.c.l.b16 %v775
          %v907 = vunpack.c.h.b16 %v775
          %v908 = vunpack.c.l.b16 %v776
          %v909 = vunpack.c.h.b16 %v776
          %v910 = vunpack.c.l.b16 %v777
          %v911 = vunpack.c.h.b16 %v777
          %v912 = vunpack.c.l.b16 %v778
          %v913 = vunpack.c.h.b16 %v778
          %v914 = vunpack.c.l.b16 %v779
          %v915 = vunpack.c.h.b16 %v779
          %v916 = vunpack.c.l.b16 %v780
          %v917 = vunpack.c.h.b16 %v780
          %v918 = vunpack.c.l.b16 %v781
          %v919 = vunpack.c.h.b16 %v781
          %v920 = vunpack.c.l.b16 %v782
          %v921 = vunpack.c.h.b16 %v782
          %v922 = vunpack.c.l.b16 %v783
          %v923 = vunpack.c.h.b16 %v783
          %v924 = vunpack.c.l.b16 %v784
          %v925 = vunpack.c.h.b16 %v784
          %v926 = vunpack.c.l.b16 %v785
          %v927 = vunpack.c.h.b16 %v785
          %v928 = vunpack.c.l.b16 %v786
          %v929 = vunpack.c.h.b16 %v786
          %v930 = vunpack.c.l.b16 %v787
          %v931 = vunpack.c.h.b16 %v787
          %v932 = vpack.c.b16 %v870, %v868
          %v933 = vpack.c.b16 %v871, %v869
          %v934 = vpack.c.b16 %v874, %v872
          %v935 = vpack.c.b16 %v875, %v873
          %v936 = vpack.c.b16 %v878, %v876
          %v937 = vpack.c.b16 %v879, %v877
          %v938 = vpack.c.b16 %v882, %v880
          %v939 = vpack.c.b16 %v883, %v881
          %v940 = vpack.c.b16 %v886, %v884
          %v941 = vpack.c.b16 %v887, %v885
          %v942 = vpack.c.b16 %v890, %v888
          %v943 = vpack.c.b16 %v891, %v889
          %v944 = vpack.c.b16 %v894, %v892
          %v945 = vpack.c.b16 %v895, %v893
          %v946 = vpack.c.b16 %v898, %v896
          %v947 = vpack.c.b16 %v899, %v897
          %v948 = vpack.c.b16 %v902, %v900
          %v949 = vpack.c.b16 %v903, %v901
          %v950 = vpack.c.b16 %v906, %v904
          %v951 = vpack.c.b16 %v907, %v905
          %v952 = vpack.c.b16 %v910, %v908
          %v953 = vpack.c.b16 %v911, %v909
          %v954 = vpack.c.b16 %v914, %v912
          %v955 = vpack.c.b16 %v915, %v913
          %v956 = vpack.c.b16 %v918, %v916
          %v957 = vpack.c.b16 %v919, %v917
          %v958 = vpack.c.b16 %v922, %v920
          %v959 = vpack.c.b16 %v923, %v921
          %v960 = vpack.c.b16 %v926, %v924
          %v961 = vpack.c.b16 %v927, %v925
          %v962 = vpack.c.b16 %v930, %v928
          %v963 = vpack.c.b16 %v931, %v929
          %996 = vmatprep.subr.bf16.mxu0 0
          %997 = vmatpush1.bf16.msra.mxu0 %v820
          %998 = vmatprep.subr.bf16.mxu0 0
          %999 = vmatpush1.bf16.msra.mxu0 %v821
          %1000 = vmatprep.subr.bf16.mxu0 0
          %1001 = vmatpush1.bf16.msra.mxu0 %v822
          %1002 = vmatprep.subr.bf16.mxu0 0
          %1003 = vmatpush1.bf16.msra.mxu0 %v823
          %1004 = vmatprep.subr.bf16.mxu0 0
          %1005 = vmatpush1.bf16.msra.mxu0 %v824
          %1006 = vmatprep.subr.bf16.mxu0 0
          %1007 = vmatpush1.bf16.msra.mxu0 %v825
          %1008 = vmatprep.subr.bf16.mxu0 0
          %1009 = vmatpush1.bf16.msra.mxu0 %v826
          %1010 = vmatprep.subr.bf16.mxu0 0
          %1011 = vmatpush1.bf16.msra.mxu0 %v827
          %1012 = vmatprep.subr.bf16.mxu0 0
          %1013 = vmatpush1.bf16.msra.mxu0 %v828
          %1014 = vmatprep.subr.bf16.mxu0 0
          %1015 = vmatpush1.bf16.msra.mxu0 %v829
          %1016 = vmatprep.subr.bf16.mxu0 0
          %1017 = vmatpush1.bf16.msra.mxu0 %v830
          %1018 = vmatprep.subr.bf16.mxu0 0
          %1019 = vmatpush1.bf16.msra.mxu0 %v831
          %1020 = vmatprep.subr.bf16.mxu0 0
          %1021 = vmatpush1.bf16.msra.mxu0 %v832
          %1022 = vmatprep.subr.bf16.mxu0 0
          %1023 = vmatpush1.bf16.msra.mxu0 %v833
          %1024 = vmatprep.subr.bf16.mxu0 0
          %1025 = vmatpush1.bf16.msra.mxu0 %v834
          %1026 = vmatprep.subr.bf16.mxu0 0
          %1027 = vmatpush1.bf16.msra.mxu0 %v835
          %1028 = vmatprep.mubr.bf16.mxu0 %v933
          %1029 = vmatmul.mubr.bf16.gmra.mrb[0].mxu0 %v932
          %v1030 = vpop.f32.mrb[0].mxu0
          %v1031 = vadd.f32 0.0, %v1030
          %v1032 = vpop.f32.mrb[0].mxu0
          %v1033 = vpop.f32.mrb[0].mxu0
          %v1034 = vadd.f32 0.0, %v1033
          %v1035 = vpop.f32.mrb[0].mxu0
          %1036 = vmatprep.mubr.bf16.mxu0 %v935
          %1037 = vmatmul.mubr.bf16.gmra.mrb[0].mxu0 %v934
          %v1038 = vpop.f32.mrb[0].mxu0
          %v1039 = vadd.f32 0.0, %v1038
          %v1040 = vpop.f32.mrb[0].mxu0
          %v1041 = vpop.f32.mrb[0].mxu0
          %v1042 = vadd.f32 0.0, %v1041
          %v1043 = vpop.f32.mrb[0].mxu0
          %1044 = vmatprep.mubr.bf16.mxu0 %v937
          %1045 = vmatmul.mubr.bf16.gmra.mrb[0].mxu0 %v936
          %v1046 = vpop.f32.mrb[0].mxu0
          %v1047 = vadd.f32 0.0, %v1046
          %v1048 = vpop.f32.mrb[0].mxu0
          %v1049 = vpop.f32.mrb[0].mxu0
          %v1050 = vadd.f32 0.0, %v1049
          %v1051 = vpop.f32.mrb[0].mxu0
          %1052 = vmatprep.mubr.bf16.mxu0 %v939
          %1053 = vmatmul.mubr.bf16.gmra.mrb[0].mxu0 %v938
          %v1054 = vpop.f32.mrb[0].mxu0
          %v1055 = vadd.f32 0.0, %v1054
          %v1056 = vpop.f32.mrb[0].mxu0
          %v1057 = vpop.f32.mrb[0].mxu0
          %v1058 = vadd.f32 0.0, %v1057
          %v1059 = vpop.f32.mrb[0].mxu0
          %1060 = vmatprep.mubr.bf16.mxu0 %v941
          %1061 = vmatmul.mubr.bf16.gmra.mrb[0].mxu0 %v940
          %v1062 = vpop.f32.mrb[0].mxu0
          %v1063 = vadd.f32 0.0, %v1062
          %v1064 = vpop.f32.mrb[0].mxu0
          %v1065 = vpop.f32.mrb[0].mxu0
          %v1066 = vadd.f32 0.0, %v1065
          %v1067 = vpop.f32.mrb[0].mxu0
          %1068 = vmatprep.mubr.bf16.mxu0 %v943
          %1069 = vmatmul.mubr.bf16.gmra.mrb[0].mxu0 %v942
          %v1070 = vpop.f32.mrb[0].mxu0
          %v1071 = vadd.f32 0.0, %v1070
          %v1072 = vpop.f32.mrb[0].mxu0
          %v1073 = vpop.f32.mrb[0].mxu0
          %v1074 = vadd.f32 0.0, %v1073
          %v1075 = vpop.f32.mrb[0].mxu0
          %1076 = vmatprep.mubr.bf16.mxu0 %v945
          %1077 = vmatmul.mubr.bf16.gmra.mrb[0].mxu0 %v944
          %v1078 = vpop.f32.mrb[0].mxu0
          %v1079 = vadd.f32 0.0, %v1078
          %v1080 = vpop.f32.mrb[0].mxu0
          %v1081 = vpop.f32.mrb[0].mxu0
          %v1082 = vadd.f32 0.0, %v1081
          %v1083 = vpop.f32.mrb[0].mxu0
          %1084 = vmatprep.mubr.bf16.mxu0 %v947
          %1085 = vmatmul.mubr.bf16.gmra.mrb[0].mxu0 %v946
          %v1086 = vpop.f32.mrb[0].mxu0
          %v1087 = vadd.f32 0.0, %v1086
          %v1088 = vpop.f32.mrb[0].mxu0
          %v1089 = vpop.f32.mrb[0].mxu0
          %v1090 = vadd.f32 0.0, %v1089
          %v1091 = vpop.f32.mrb[0].mxu0
          %1092 = vmatprep.mubr.bf16.mxu0 %v949
          %1093 = vmatmul.mubr.bf16.gmra.mrb[0].mxu0 %v948
          %v1094 = vpop.f32.mrb[0].mxu0
          %v1095 = vadd.f32 0.0, %v1094
          %v1096 = vpop.f32.mrb[0].mxu0
          %v1097 = vpop.f32.mrb[0].mxu0
          %v1098 = vadd.f32 0.0, %v1097
          %v1099 = vpop.f32.mrb[0].mxu0
          %1100 = vmatprep.mubr.bf16.mxu0 %v951
          %1101 = vmatmul.mubr.bf16.gmra.mrb[0].mxu0 %v950
          %v1102 = vpop.f32.mrb[0].mxu0
          %v1103 = vadd.f32 0.0, %v1102
          %v1104 = vpop.f32.mrb[0].mxu0
          %v1105 = vpop.f32.mrb[0].mxu0
          %v1106 = vadd.f32 0.0, %v1105
          %v1107 = vpop.f32.mrb[0].mxu0
          %1108 = vmatprep.mubr.bf16.mxu0 %v953
          %1109 = vmatmul.mubr.bf16.gmra.mrb[0].mxu0 %v952
          %v1110 = vpop.f32.mrb[0].mxu0
          %v1111 = vadd.f32 0.0, %v1110
          %v1112 = vpop.f32.mrb[0].mxu0
          %v1113 = vpop.f32.mrb[0].mxu0
          %v1114 = vadd.f32 0.0, %v1113
          %v1115 = vpop.f32.mrb[0].mxu0
          %1116 = vmatprep.mubr.bf16.mxu0 %v955
          %1117 = vmatmul.mubr.bf16.gmra.mrb[0].mxu0 %v954
          %v1118 = vpop.f32.mrb[0].mxu0
          %v1119 = vadd.f32 0.0, %v1118
          %v1120 = vpop.f32.mrb[0].mxu0
          %v1121 = vpop.f32.mrb[0].mxu0
          %v1122 = vadd.f32 0.0, %v1121
          %v1123 = vpop.f32.mrb[0].mxu0
          %1124 = vmatprep.mubr.bf16.mxu0 %v957
          %1125 = vmatmul.mubr.bf16.gmra.mrb[0].mxu0 %v956
          %v1126 = vpop.f32.mrb[0].mxu0
          %v1127 = vadd.f32 0.0, %v1126
          %v1128 = vpop.f32.mrb[0].mxu0
          %v1129 = vpop.f32.mrb[0].mxu0
          %v1130 = vadd.f32 0.0, %v1129
          %v1131 = vpop.f32.mrb[0].mxu0
          %1132 = vmatprep.mubr.bf16.mxu0 %v959
          %1133 = vmatmul.mubr.bf16.gmra.mrb[0].mxu0 %v958
          %v1134 = vpop.f32.mrb[0].mxu0
          %v1135 = vadd.f32 0.0, %v1134
          %v1136 = vpop.f32.mrb[0].mxu0
          %v1137 = vpop.f32.mrb[0].mxu0
          %v1138 = vadd.f32 0.0, %v1137
          %v1139 = vpop.f32.mrb[0].mxu0
          %1140 = vmatprep.mubr.bf16.mxu0 %v961
          %1141 = vmatmul.mubr.bf16.gmra.mrb[0].mxu0 %v960
          %v1142 = vpop.f32.mrb[0].mxu0
          %v1143 = vadd.f32 0.0, %v1142
          %v1144 = vpop.f32.mrb[0].mxu0
          %v1145 = vpop.f32.mrb[0].mxu0
          %v1146 = vadd.f32 0.0, %v1145
          %v1147 = vpop.f32.mrb[0].mxu0
          %1148 = vmatprep.mubr.bf16.mxu0 %v963
          %1149 = vmatmul.mubr.bf16.gmra.mrb[0].mxu0 %v962
          %v1150 = vpop.f32.mrb[0].mxu0
          %v1151 = vadd.f32 0.0, %v1150
          %v1152 = vpop.f32.mrb[0].mxu0
          %v1153 = vpop.f32.mrb[0].mxu0
          %v1154 = vadd.f32 0.0, %v1153
          %v1155 = vpop.f32.mrb[0].mxu0
          %1156 = vdwg.mxu0
          %1157 = vst [vmem:[#allocation2] sm:$0xff] %v1031
          %1158 = vst [vmem:[#allocation2 + $0x8] sm:$0xff] %v1034
          %1159 = vst [vmem:[#allocation2 + $0x10] sm:$0xff] %v1039
          %1160 = vst [vmem:[#allocation2 + $0x18] sm:$0xff] %v1042
          %1161 = vst [vmem:[#allocation2 + $0x20] sm:$0xff] %v1047
          %1162 = vst [vmem:[#allocation2 + $0x28] sm:$0xff] %v1050
          %1163 = vst [vmem:[#allocation2 + $0x30] sm:$0xff] %v1055
          %1164 = vst [vmem:[#allocation2 + $0x38] sm:$0xff] %v1058
          %1165 = vst [vmem:[#allocation2 + $0x40] sm:$0xff] %v1063
          %1166 = vst [vmem:[#allocation2 + $0x48] sm:$0xff] %v1066
          %1167 = vst [vmem:[#allocation2 + $0x50] sm:$0xff] %v1071
          %1168 = vst [vmem:[#allocation2 + $0x58] sm:$0xff] %v1074
          %1169 = vst [vmem:[#allocation2 + $0x60] sm:$0xff] %v1079
          %1170 = vst [vmem:[#allocation2 + $0x68] sm:$0xff] %v1082
          %1171 = vst [vmem:[#allocation2 + $0x70] sm:$0xff] %v1087
          %1172 = vst [vmem:[#allocation2 + $0x78] sm:$0xff] %v1090
          %1173 = vst [vmem:[#allocation2 + $0x80] sm:$0xff] %v1095
          %1174 = vst [vmem:[#allocation2 + $0x88] sm:$0xff] %v1098
          %1175 = vst [vmem:[#allocation2 + $0x90] sm:$0xff] %v1103
          %1176 = vst [vmem:[#allocation2 + $0x98] sm:$0xff] %v1106
          %1177 = vst [vmem:[#allocation2 + $0xa0] sm:$0xff] %v1111
          %1178 = vst [vmem:[#allocation2 + $0xa8] sm:$0xff] %v1114
          %1179 = vst [vmem:[#allocation2 + $0xb0] sm:$0xff] %v1119
          %1180 = vst [vmem:[#allocation2 + $0xb8] sm:$0xff] %v1122
          %1181 = vst [vmem:[#allocation2 + $0xc0] sm:$0xff] %v1127
          %1182 = vst [vmem:[#allocation2 + $0xc8] sm:$0xff] %v1130
          %1183 = vst [vmem:[#allocation2 + $0xd0] sm:$0xff] %v1135
          %1184 = vst [vmem:[#allocation2 + $0xd8] sm:$0xff] %v1138
          %1185 = vst [vmem:[#allocation2 + $0xe0] sm:$0xff] %v1143
          %1186 = vst [vmem:[#allocation2 + $0xe8] sm:$0xff] %v1146
          %1187 = vst [vmem:[#allocation2 + $0xf0] sm:$0xff] %v1151
          %1188 = vst [vmem:[#allocation2 + $0xf8] sm:$0xff] %v1154
        $region60: #{tpu_custom_call.1} parent=35 // pred_fallthru
          _
        %p1189 = scmp.eq.s32.totalorder %s18, 1
        // Predicated region
        $region61: #{tpu_custom_call.1} parent=35 // pred_check
          %p1190 = pneg %p1189
        $region62: #{tpu_custom_call.1} parent=35 // pred_check_branch
          %1192 = sbr.rel (%p1190) target = $region64
        $region63: #{tpu_custom_call.1} parent=35 // pred_region
          %v1193 = vld [vmem:[#allocation2] sm:$0xff]
          %v1194 = vld [vmem:[#allocation2 + $0x8] sm:$0xff]
          %v1195 = vld [vmem:[#allocation2 + $0x10] sm:$0xff]
          %v1196 = vld [vmem:[#allocation2 + $0x18] sm:$0xff]
          %v1197 = vld [vmem:[#allocation2 + $0x20] sm:$0xff]
          %v1198 = vld [vmem:[#allocation2 + $0x28] sm:$0xff]
          %v1199 = vld [vmem:[#allocation2 + $0x30] sm:$0xff]
          %v1200 = vld [vmem:[#allocation2 + $0x38] sm:$0xff]
          %v1201 = vld [vmem:[#allocation2 + $0x40] sm:$0xff]
          %v1202 = vld [vmem:[#allocation2 + $0x48] sm:$0xff]
          %v1203 = vld [vmem:[#allocation2 + $0x50] sm:$0xff]
          %v1204 = vld [vmem:[#allocation2 + $0x58] sm:$0xff]
          %v1205 = vld [vmem:[#allocation2 + $0x60] sm:$0xff]
          %v1206 = vld [vmem:[#allocation2 + $0x68] sm:$0xff]
          %v1207 = vld [vmem:[#allocation2 + $0x70] sm:$0xff]
          %v1208 = vld [vmem:[#allocation2 + $0x78] sm:$0xff]
          %v1209 = vld [vmem:[#allocation2 + $0x80] sm:$0xff]
          %v1210 = vld [vmem:[#allocation2 + $0x88] sm:$0xff]
          %v1211 = vld [vmem:[#allocation2 + $0x90] sm:$0xff]
          %v1212 = vld [vmem:[#allocation2 + $0x98] sm:$0xff]
          %v1213 = vld [vmem:[#allocation2 + $0xa0] sm:$0xff]
          %v1214 = vld [vmem:[#allocation2 + $0xa8] sm:$0xff]
          %v1215 = vld [vmem:[#allocation2 + $0xb0] sm:$0xff]
          %v1216 = vld [vmem:[#allocation2 + $0xb8] sm:$0xff]
          %v1217 = vld [vmem:[#allocation2 + $0xc0] sm:$0xff]
          %v1218 = vld [vmem:[#allocation2 + $0xc8] sm:$0xff]
          %v1219 = vld [vmem:[#allocation2 + $0xd0] sm:$0xff]
          %v1220 = vld [vmem:[#allocation2 + $0xd8] sm:$0xff]
          %v1221 = vld [vmem:[#allocation2 + $0xe0] sm:$0xff]
          %v1222 = vld [vmem:[#allocation2 + $0xe8] sm:$0xff]
          %v1223 = vld [vmem:[#allocation2 + $0xf0] sm:$0xff]
          %v1224 = vld [vmem:[#allocation2 + $0xf8] sm:$0xff]
          %v1225 = vpack.c.bf16 %v1194, %v1193
          %v1226 = vpack.c.bf16 %v1196, %v1195
          %v1227 = vpack.c.bf16 %v1198, %v1197
          %v1228 = vpack.c.bf16 %v1200, %v1199
          %v1229 = vpack.c.bf16 %v1202, %v1201
          %v1230 = vpack.c.bf16 %v1204, %v1203
          %v1231 = vpack.c.bf16 %v1206, %v1205
          %v1232 = vpack.c.bf16 %v1208, %v1207
          %v1233 = vpack.c.bf16 %v1210, %v1209
          %v1234 = vpack.c.bf16 %v1212, %v1211
          %v1235 = vpack.c.bf16 %v1214, %v1213
          %v1236 = vpack.c.bf16 %v1216, %v1215
          %v1237 = vpack.c.bf16 %v1218, %v1217
          %v1238 = vpack.c.bf16 %v1220, %v1219
          %v1239 = vpack.c.bf16 %v1222, %v1221
          %v1240 = vpack.c.bf16 %v1224, %v1223
          %v1241 = vld [vmem:[#allocation9] sm:$0xf]
          %v1242 = vld [vmem:[#allocation9 + $0x4] sm:$0xf]
          %v1243 = vld [vmem:[#allocation9 + $0x8] sm:$0xf]
          %v1244 = vld [vmem:[#allocation9 + $0xc] sm:$0xf]
          %v1245 = vld [vmem:[#allocation9 + $0x10] sm:$0xf]
          %v1246 = vld [vmem:[#allocation9 + $0x14] sm:$0xf]
          %v1247 = vld [vmem:[#allocation9 + $0x18] sm:$0xf]
          %v1248 = vld [vmem:[#allocation9 + $0x1c] sm:$0xf]
          %v1249 = vld [vmem:[#allocation9 + $0x20] sm:$0xf]
          %v1250 = vld [vmem:[#allocation9 + $0x24] sm:$0xf]
          %v1251 = vld [vmem:[#allocation9 + $0x28] sm:$0xf]
          %v1252 = vld [vmem:[#allocation9 + $0x2c] sm:$0xf]
          %v1253 = vld [vmem:[#allocation9 + $0x30] sm:$0xf]
          %v1254 = vld [vmem:[#allocation9 + $0x34] sm:$0xf]
          %v1255 = vld [vmem:[#allocation9 + $0x38] sm:$0xf]
          %v1256 = vld [vmem:[#allocation9 + $0x3c] sm:$0xf]
          %v1257 = vld [vmem:[%s3] sm:$0x1]
          %v1259 = vlaneseq
          %v1260 = vshrl.u32 %v1259, 7
          %v1261 = vsub.s32 0, %v1260
          %v1262 = vrot.slane %v1257, %v1261
          %v1280 = vunpack.c.l.b16 %v1241
          %v1281 = vunpack.c.l.b16 %v1242
          %v1282 = vunpack.c.l.b16 %v1243
          %v1283 = vunpack.c.l.b16 %v1244
          %v1284 = vunpack.c.l.b16 %v1245
          %v1285 = vunpack.c.l.b16 %v1246
          %v1286 = vunpack.c.l.b16 %v1247
          %v1287 = vunpack.c.l.b16 %v1248
          %v1288 = vunpack.c.l.b16 %v1249
          %v1289 = vunpack.c.l.b16 %v1250
          %v1290 = vunpack.c.l.b16 %v1251
          %v1291 = vunpack.c.l.b16 %v1252
          %v1292 = vunpack.c.l.b16 %v1253
          %v1293 = vunpack.c.l.b16 %v1254
          %v1294 = vunpack.c.l.b16 %v1255
          %v1295 = vunpack.c.l.b16 %v1256
          %v1296 = vpack.c.b16 %v1281, %v1280
          %v1297 = vpack.c.b16 %v1283, %v1282
          %v1298 = vpack.c.b16 %v1285, %v1284
          %v1299 = vpack.c.b16 %v1287, %v1286
          %v1300 = vpack.c.b16 %v1289, %v1288
          %v1301 = vpack.c.b16 %v1291, %v1290
          %v1302 = vpack.c.b16 %v1293, %v1292
          %v1303 = vpack.c.b16 %v1295, %v1294
          %1312 = vmatprep.subr.bf16.mxu0 0
          %1313 = vmatpush1.bf16.msra.mxu0 %v1296
          %1314 = vmatprep.subr.bf16.mxu0 0
          %1315 = vmatpush1.bf16.msra.mxu0 %v1297
          %1316 = vmatprep.subr.bf16.mxu0 0
          %1317 = vmatpush1.bf16.msra.mxu0 %v1298
          %1318 = vmatprep.subr.bf16.mxu0 0
          %1319 = vmatpush1.bf16.msra.mxu0 %v1299
          %1320 = vmatprep.subr.bf16.mxu0 0
          %1321 = vmatpush1.bf16.msra.mxu0 %v1300
          %1322 = vmatprep.subr.bf16.mxu0 0
          %1323 = vmatpush1.bf16.msra.mxu0 %v1301
          %1324 = vmatprep.subr.bf16.mxu0 0
          %1325 = vmatpush1.bf16.msra.mxu0 %v1302
          %1326 = vmatprep.subr.bf16.mxu0 0
          %1327 = vmatpush1.bf16.msra.mxu0 %v1303
          %1328 = vmatprep.subr.bf16.mxu0 0
          %1329 = vmatpush1.bf16.msra.mxu0 0
          %1330 = vmatprep.subr.bf16.mxu0 0
          %1331 = vmatpush1.bf16.msra.mxu0 0
          %1332 = vmatprep.subr.bf16.mxu0 0
          %1333 = vmatpush1.bf16.msra.mxu0 0
          %1334 = vmatprep.subr.bf16.mxu0 0
          %1335 = vmatpush1.bf16.msra.mxu0 0
          %1336 = vmatprep.subr.bf16.mxu0 0
          %1337 = vmatpush1.bf16.msra.mxu0 0
          %1338 = vmatprep.subr.bf16.mxu0 0
          %1339 = vmatpush1.bf16.msra.mxu0 0
          %1340 = vmatprep.subr.bf16.mxu0 0
          %1341 = vmatpush1.bf16.msra.mxu0 0
          %1342 = vmatprep.subr.bf16.mxu0 0
          %1343 = vmatpush1.bf16.msra.mxu0 0
          %1344 = vmatprep.mubr.bf16.mxu0 0
          %1345 = vmatmul.mubr.bf16.gmra.mrb[0].mxu0 %v1225
          %v1346 = vpop.f32.mrb[0].mxu0
          %v1347 = vadd.f32 %v1262, %v1346
          %v1348 = vpop.f32.mrb[0].mxu0
          %v1349 = vpop.f32.mrb[0].mxu0
          %v1350 = vadd.f32 %v1262, %v1349
          %v1351 = vpop.f32.mrb[0].mxu0
          %1352 = vmatprep.mubr.bf16.mxu0 0
          %1353 = vmatmul.mubr.bf16.gmra.mrb[0].mxu0 %v1226
          %v1354 = vpop.f32.mrb[0].mxu0
          %v1355 = vadd.f32 %v1262, %v1354
          %v1356 = vpop.f32.mrb[0].mxu0
          %v1357 = vpop.f32.mrb[0].mxu0
          %v1358 = vadd.f32 %v1262, %v1357
          %v1359 = vpop.f32.mrb[0].mxu0
          %1360 = vmatprep.mubr.bf16.mxu0 0
          %1361 = vmatmul.mubr.bf16.gmra.mrb[0].mxu0 %v1227
          %v1362 = vpop.f32.mrb[0].mxu0
          %v1363 = vadd.f32 %v1262, %v1362
          %v1364 = vpop.f32.mrb[0].mxu0
          %v1365 = vpop.f32.mrb[0].mxu0
          %v1366 = vadd.f32 %v1262, %v1365
          %v1367 = vpop.f32.mrb[0].mxu0
          %1368 = vmatprep.mubr.bf16.mxu0 0
          %1369 = vmatmul.mubr.bf16.gmra.mrb[0].mxu0 %v1228
          %v1370 = vpop.f32.mrb[0].mxu0
          %v1371 = vadd.f32 %v1262, %v1370
          %v1372 = vpop.f32.mrb[0].mxu0
          %v1373 = vpop.f32.mrb[0].mxu0
          %v1374 = vadd.f32 %v1262, %v1373
          %v1375 = vpop.f32.mrb[0].mxu0
          %1376 = vmatprep.mubr.bf16.mxu0 0
          %1377 = vmatmul.mubr.bf16.gmra.mrb[0].mxu0 %v1229
          %v1378 = vpop.f32.mrb[0].mxu0
          %v1379 = vadd.f32 %v1262, %v1378
          %v1380 = vpop.f32.mrb[0].mxu0
          %v1381 = vpop.f32.mrb[0].mxu0
          %v1382 = vadd.f32 %v1262, %v1381
          %v1383 = vpop.f32.mrb[0].mxu0
          %1384 = vmatprep.mubr.bf16.mxu0 0
          %1385 = vmatmul.mubr.bf16.gmra.mrb[0].mxu0 %v1230
          %v1386 = vpop.f32.mrb[0].mxu0
          %v1387 = vadd.f32 %v1262, %v1386
          %v1388 = vpop.f32.mrb[0].mxu0
          %v1389 = vpop.f32.mrb[0].mxu0
          %v1390 = vadd.f32 %v1262, %v1389
          %v1391 = vpop.f32.mrb[0].mxu0
          %1392 = vmatprep.mubr.bf16.mxu0 0
          %1393 = vmatmul.mubr.bf16.gmra.mrb[0].mxu0 %v1231
          %v1394 = vpop.f32.mrb[0].mxu0
          %v1395 = vadd.f32 %v1262, %v1394
          %v1396 = vpop.f32.mrb[0].mxu0
          %v1397 = vpop.f32.mrb[0].mxu0
          %v1398 = vadd.f32 %v1262, %v1397
          %v1399 = vpop.f32.mrb[0].mxu0
          %1400 = vmatprep.mubr.bf16.mxu0 0
          %1401 = vmatmul.mubr.bf16.gmra.mrb[0].mxu0 %v1232
          %v1402 = vpop.f32.mrb[0].mxu0
          %v1403 = vadd.f32 %v1262, %v1402
          %v1404 = vpop.f32.mrb[0].mxu0
          %v1405 = vpop.f32.mrb[0].mxu0
          %v1406 = vadd.f32 %v1262, %v1405
          %v1407 = vpop.f32.mrb[0].mxu0
          %1408 = vmatprep.mubr.bf16.mxu0 0
          %1409 = vmatmul.mubr.bf16.gmra.mrb[0].mxu0 %v1233
          %v1410 = vpop.f32.mrb[0].mxu0
          %v1411 = vadd.f32 %v1262, %v1410
          %v1412 = vpop.f32.mrb[0].mxu0
          %v1413 = vpop.f32.mrb[0].mxu0
          %v1414 = vadd.f32 %v1262, %v1413
          %v1415 = vpop.f32.mrb[0].mxu0
          %1416 = vmatprep.mubr.bf16.mxu0 0
          %1417 = vmatmul.mubr.bf16.gmra.mrb[0].mxu0 %v1234
          %v1418 = vpop.f32.mrb[0].mxu0
          %v1419 = vadd.f32 %v1262, %v1418
          %v1420 = vpop.f32.mrb[0].mxu0
          %v1421 = vpop.f32.mrb[0].mxu0
          %v1422 = vadd.f32 %v1262, %v1421
          %v1423 = vpop.f32.mrb[0].mxu0
          %1424 = vmatprep.mubr.bf16.mxu0 0
          %1425 = vmatmul.mubr.bf16.gmra.mrb[0].mxu0 %v1235
          %v1426 = vpop.f32.mrb[0].mxu0
          %v1427 = vadd.f32 %v1262, %v1426
          %v1428 = vpop.f32.mrb[0].mxu0
          %v1429 = vpop.f32.mrb[0].mxu0
          %v1430 = vadd.f32 %v1262, %v1429
          %v1431 = vpop.f32.mrb[0].mxu0
          %1432 = vmatprep.mubr.bf16.mxu0 0
          %1433 = vmatmul.mubr.bf16.gmra.mrb[0].mxu0 %v1236
          %v1434 = vpop.f32.mrb[0].mxu0
          %v1435 = vadd.f32 %v1262, %v1434
          %v1436 = vpop.f32.mrb[0].mxu0
          %v1437 = vpop.f32.mrb[0].mxu0
          %v1438 = vadd.f32 %v1262, %v1437
          %v1439 = vpop.f32.mrb[0].mxu0
          %1440 = vmatprep.mubr.bf16.mxu0 0
          %1441 = vmatmul.mubr.bf16.gmra.mrb[0].mxu0 %v1237
          %v1442 = vpop.f32.mrb[0].mxu0
          %v1443 = vadd.f32 %v1262, %v1442
          %v1444 = vpop.f32.mrb[0].mxu0
          %v1445 = vpop.f32.mrb[0].mxu0
          %v1446 = vadd.f32 %v1262, %v1445
          %v1447 = vpop.f32.mrb[0].mxu0
          %1448 = vmatprep.mubr.bf16.mxu0 0
          %1449 = vmatmul.mubr.bf16.gmra.mrb[0].mxu0 %v1238
          %v1450 = vpop.f32.mrb[0].mxu0
          %v1451 = vadd.f32 %v1262, %v1450
          %v1452 = vpop.f32.mrb[0].mxu0
          %v1453 = vpop.f32.mrb[0].mxu0
          %v1454 = vadd.f32 %v1262, %v1453
          %v1455 = vpop.f32.mrb[0].mxu0
          %1456 = vmatprep.mubr.bf16.mxu0 0
          %1457 = vmatmul.mubr.bf16.gmra.mrb[0].mxu0 %v1239
          %v1458 = vpop.f32.mrb[0].mxu0
          %v1459 = vadd.f32 %v1262, %v1458
          %v1460 = vpop.f32.mrb[0].mxu0
          %v1461 = vpop.f32.mrb[0].mxu0
          %v1462 = vadd.f32 %v1262, %v1461
          %v1463 = vpop.f32.mrb[0].mxu0
          %1464 = vmatprep.mubr.bf16.mxu0 0
          %1465 = vmatmul.mubr.bf16.gmra.mrb[0].mxu0 %v1240
          %v1466 = vpop.f32.mrb[0].mxu0
          %v1467 = vadd.f32 %v1262, %v1466
          %v1468 = vpop.f32.mrb[0].mxu0
          %v1469 = vpop.f32.mrb[0].mxu0
          %v1470 = vadd.f32 %v1262, %v1469
          %v1471 = vpop.f32.mrb[0].mxu0
          %1472 = vdwg.mxu0
          %1473 = vmax.xlane.f32.xlu0 %v1347
          %v1474 = vpop.xlane.xlu0 %1473
          %1475 = vmax.xlane.f32.xlu0 %v1350
          %v1476 = vpop.xlane.xlu0 %1475
          %1477 = vmax.xlane.f32.xlu0 %v1355
          %v1478 = vpop.xlane.xlu0 %1477
          %1479 = vmax.xlane.f32.xlu0 %v1358
          %v1480 = vpop.xlane.xlu0 %1479
          %1481 = vmax.xlane.f32.xlu0 %v1363
          %v1482 = vpop.xlane.xlu0 %1481
          %1483 = vmax.xlane.f32.xlu0 %v1366
          %v1484 = vpop.xlane.xlu0 %1483
          %1485 = vmax.xlane.f32.xlu0 %v1371
          %v1486 = vpop.xlane.xlu0 %1485
          %1487 = vmax.xlane.f32.xlu0 %v1374
          %v1488 = vpop.xlane.xlu0 %1487
          %1489 = vmax.xlane.f32.xlu0 %v1379
          %v1490 = vpop.xlane.xlu0 %1489
          %1491 = vmax.xlane.f32.xlu0 %v1382
          %v1492 = vpop.xlane.xlu0 %1491
          %1493 = vmax.xlane.f32.xlu0 %v1387
          %v1494 = vpop.xlane.xlu0 %1493
          %1495 = vmax.xlane.f32.xlu0 %v1390
          %v1496 = vpop.xlane.xlu0 %1495
          %1497 = vmax.xlane.f32.xlu0 %v1395
          %v1498 = vpop.xlane.xlu0 %1497
          %1499 = vmax.xlane.f32.xlu0 %v1398
          %v1500 = vpop.xlane.xlu0 %1499
          %1501 = vmax.xlane.f32.xlu0 %v1403
          %v1502 = vpop.xlane.xlu0 %1501
          %1503 = vmax.xlane.f32.xlu0 %v1406
          %v1504 = vpop.xlane.xlu0 %1503
          %1505 = vmax.xlane.f32.xlu0 %v1411
          %v1506 = vpop.xlane.xlu0 %1505
          %1507 = vmax.xlane.f32.xlu0 %v1414
          %v1508 = vpop.xlane.xlu0 %1507
          %1509 = vmax.xlane.f32.xlu0 %v1419
          %v1510 = vpop.xlane.xlu0 %1509
          %1511 = vmax.xlane.f32.xlu0 %v1422
          %v1512 = vpop.xlane.xlu0 %1511
          %1513 = vmax.xlane.f32.xlu0 %v1427
          %v1514 = vpop.xlane.xlu0 %1513
          %1515 = vmax.xlane.f32.xlu0 %v1430
          %v1516 = vpop.xlane.xlu0 %1515
          %1517 = vmax.xlane.f32.xlu0 %v1435
          %v1518 = vpop.xlane.xlu0 %1517
          %1519 = vmax.xlane.f32.xlu0 %v1438
          %v1520 = vpop.xlane.xlu0 %1519
          %1521 = vmax.xlane.f32.xlu0 %v1443
          %v1522 = vpop.xlane.xlu0 %1521
          %1523 = vmax.xlane.f32.xlu0 %v1446
          %v1524 = vpop.xlane.xlu0 %1523
          %1525 = vmax.xlane.f32.xlu0 %v1451
          %v1526 = vpop.xlane.xlu0 %1525
          %1527 = vmax.xlane.f32.xlu0 %v1454
          %v1528 = vpop.xlane.xlu0 %1527
          %1529 = vmax.xlane.f32.xlu0 %v1459
          %v1530 = vpop.xlane.xlu0 %1529
          %1531 = vmax.xlane.f32.xlu0 %v1462
          %v1532 = vpop.xlane.xlu0 %1531
          %1533 = vmax.xlane.f32.xlu0 %v1467
          %v1534 = vpop.xlane.xlu0 %1533
          %1535 = vmax.xlane.f32.xlu0 %v1470
          %v1536 = vpop.xlane.xlu0 %1535
          %v1537 = vsub.f32 %v1347, %v1474
          %v1538 = vsub.f32 %v1350, %v1476
          %v1539 = vsub.f32 %v1355, %v1478
          %v1540 = vsub.f32 %v1358, %v1480
          %v1541 = vsub.f32 %v1363, %v1482
          %v1542 = vsub.f32 %v1366, %v1484
          %v1543 = vsub.f32 %v1371, %v1486
          %v1544 = vsub.f32 %v1374, %v1488
          %v1545 = vsub.f32 %v1379, %v1490
          %v1546 = vsub.f32 %v1382, %v1492
          %v1547 = vsub.f32 %v1387, %v1494
          %v1548 = vsub.f32 %v1390, %v1496
          %v1549 = vsub.f32 %v1395, %v1498
          %v1550 = vsub.f32 %v1398, %v1500
          %v1551 = vsub.f32 %v1403, %v1502
          %v1552 = vsub.f32 %v1406, %v1504
          %v1553 = vsub.f32 %v1411, %v1506
          %v1554 = vsub.f32 %v1414, %v1508
          %v1555 = vsub.f32 %v1419, %v1510
          %v1556 = vsub.f32 %v1422, %v1512
          %v1557 = vsub.f32 %v1427, %v1514
          %v1558 = vsub.f32 %v1430, %v1516
          %v1559 = vsub.f32 %v1435, %v1518
          %v1560 = vsub.f32 %v1438, %v1520
          %v1561 = vsub.f32 %v1443, %v1522
          %v1562 = vsub.f32 %v1446, %v1524
          %v1563 = vsub.f32 %v1451, %v1526
          %v1564 = vsub.f32 %v1454, %v1528
          %v1565 = vsub.f32 %v1459, %v1530
          %v1566 = vsub.f32 %v1462, %v1532
          %v1567 = vsub.f32 %v1467, %v1534
          %v1568 = vsub.f32 %v1470, %v1536
          %v1569 = vmul.f32 %v1537, 1.442695
          %v1570 = vpow.pop %v1569
          %v1571 = vmul.f32 %v1538, 1.442695
          %v1572 = vpow.pop %v1571
          %v1573 = vmul.f32 %v1539, 1.442695
          %v1574 = vpow.pop %v1573
          %v1575 = vmul.f32 %v1540, 1.442695
          %v1576 = vpow.pop %v1575
          %v1577 = vmul.f32 %v1541, 1.442695
          %v1578 = vpow.pop %v1577
          %v1579 = vmul.f32 %v1542, 1.442695
          %v1580 = vpow.pop %v1579
          %v1581 = vmul.f32 %v1543, 1.442695
          %v1582 = vpow.pop %v1581
          %v1583 = vmul.f32 %v1544, 1.442695
          %v1584 = vpow.pop %v1583
          %v1585 = vmul.f32 %v1545, 1.442695
          %v1586 = vpow.pop %v1585
          %v1587 = vmul.f32 %v1546, 1.442695
          %v1588 = vpow.pop %v1587
          %v1589 = vmul.f32 %v1547, 1.442695
          %v1590 = vpow.pop %v1589
          %v1591 = vmul.f32 %v1548, 1.442695
          %v1592 = vpow.pop %v1591
          %v1593 = vmul.f32 %v1549, 1.442695
          %v1594 = vpow.pop %v1593
          %v1595 = vmul.f32 %v1550, 1.442695
          %v1596 = vpow.pop %v1595
          %v1597 = vmul.f32 %v1551, 1.442695
          %v1598 = vpow.pop %v1597
          %v1599 = vmul.f32 %v1552, 1.442695
          %v1600 = vpow.pop %v1599
          %v1601 = vmul.f32 %v1553, 1.442695
          %v1602 = vpow.pop %v1601
          %v1603 = vmul.f32 %v1554, 1.442695
          %v1604 = vpow.pop %v1603
          %v1605 = vmul.f32 %v1555, 1.442695
          %v1606 = vpow.pop %v1605
          %v1607 = vmul.f32 %v1556, 1.442695
          %v1608 = vpow.pop %v1607
          %v1609 = vmul.f32 %v1557, 1.442695
          %v1610 = vpow.pop %v1609
          %v1611 = vmul.f32 %v1558, 1.442695
          %v1612 = vpow.pop %v1611
          %v1613 = vmul.f32 %v1559, 1.442695
          %v1614 = vpow.pop %v1613
          %v1615 = vmul.f32 %v1560, 1.442695
          %v1616 = vpow.pop %v1615
          %v1617 = vmul.f32 %v1561, 1.442695
          %v1618 = vpow.pop %v1617
          %v1619 = vmul.f32 %v1562, 1.442695
          %v1620 = vpow.pop %v1619
          %v1621 = vmul.f32 %v1563, 1.442695
          %v1622 = vpow.pop %v1621
          %v1623 = vmul.f32 %v1564, 1.442695
          %v1624 = vpow.pop %v1623
          %v1625 = vmul.f32 %v1565, 1.442695
          %v1626 = vpow.pop %v1625
          %v1627 = vmul.f32 %v1566, 1.442695
          %v1628 = vpow.pop %v1627
          %v1629 = vmul.f32 %v1567, 1.442695
          %v1630 = vpow.pop %v1629
          %v1631 = vmul.f32 %v1568, 1.442695
          %v1632 = vpow.pop %v1631
          %1633 = vadd.xlane.f32.xlu0 %v1570
          %v1634 = vpop.xlane.xlu0 %1633
          %1635 = vadd.xlane.f32.xlu0 %v1572
          %v1636 = vpop.xlane.xlu0 %1635
          %1637 = vadd.xlane.f32.xlu0 %v1574
          %v1638 = vpop.xlane.xlu0 %1637
          %1639 = vadd.xlane.f32.xlu0 %v1576
          %v1640 = vpop.xlane.xlu0 %1639
          %1641 = vadd.xlane.f32.xlu0 %v1578
          %v1642 = vpop.xlane.xlu0 %1641
          %1643 = vadd.xlane.f32.xlu0 %v1580
          %v1644 = vpop.xlane.xlu0 %1643
          %1645 = vadd.xlane.f32.xlu0 %v1582
          %v1646 = vpop.xlane.xlu0 %1645
          %1647 = vadd.xlane.f32.xlu0 %v1584
          %v1648 = vpop.xlane.xlu0 %1647
          %1649 = vadd.xlane.f32.xlu0 %v1586
          %v1650 = vpop.xlane.xlu0 %1649
          %1651 = vadd.xlane.f32.xlu0 %v1588
          %v1652 = vpop.xlane.xlu0 %1651
          %1653 = vadd.xlane.f32.xlu0 %v1590
          %v1654 = vpop.xlane.xlu0 %1653
          %1655 = vadd.xlane.f32.xlu0 %v1592
          %v1656 = vpop.xlane.xlu0 %1655
          %1657 = vadd.xlane.f32.xlu0 %v1594
          %v1658 = vpop.xlane.xlu0 %1657
          %1659 = vadd.xlane.f32.xlu0 %v1596
          %v1660 = vpop.xlane.xlu0 %1659
          %1661 = vadd.xlane.f32.xlu0 %v1598
          %v1662 = vpop.xlane.xlu0 %1661
          %1663 = vadd.xlane.f32.xlu0 %v1600
          %v1664 = vpop.xlane.xlu0 %1663
          %1665 = vadd.xlane.f32.xlu0 %v1602
          %v1666 = vpop.xlane.xlu0 %1665
          %1667 = vadd.xlane.f32.xlu0 %v1604
          %v1668 = vpop.xlane.xlu0 %1667
          %1669 = vadd.xlane.f32.xlu0 %v1606
          %v1670 = vpop.xlane.xlu0 %1669
          %1671 = vadd.xlane.f32.xlu0 %v1608
          %v1672 = vpop.xlane.xlu0 %1671
          %1673 = vadd.xlane.f32.xlu0 %v1610
          %v1674 = vpop.xlane.xlu0 %1673
          %1675 = vadd.xlane.f32.xlu0 %v1612
          %v1676 = vpop.xlane.xlu0 %1675
          %1677 = vadd.xlane.f32.xlu0 %v1614
          %v1678 = vpop.xlane.xlu0 %1677
          %1679 = vadd.xlane.f32.xlu0 %v1616
          %v1680 = vpop.xlane.xlu0 %1679
          %1681 = vadd.xlane.f32.xlu0 %v1618
          %v1682 = vpop.xlane.xlu0 %1681
          %1683 = vadd.xlane.f32.xlu0 %v1620
          %v1684 = vpop.xlane.xlu0 %1683
          %1685 = vadd.xlane.f32.xlu0 %v1622
          %v1686 = vpop.xlane.xlu0 %1685
          %1687 = vadd.xlane.f32.xlu0 %v1624
          %v1688 = vpop.xlane.xlu0 %1687
          %1689 = vadd.xlane.f32.xlu0 %v1626
          %v1690 = vpop.xlane.xlu0 %1689
          %1691 = vadd.xlane.f32.xlu0 %v1628
          %v1692 = vpop.xlane.xlu0 %1691
          %1693 = vadd.xlane.f32.xlu0 %v1630
          %v1694 = vpop.xlane.xlu0 %1693
          %1695 = vadd.xlane.f32.xlu0 %v1632
          %v1696 = vpop.xlane.xlu0 %1695
          %v1697 = vlog2.pop %v1634
          %v1698 = vmul.f32 %v1697, 0.6931472
          %v1699 = vlog2.pop %v1636
          %v1700 = vmul.f32 %v1699, 0.6931472
          %v1701 = vlog2.pop %v1638
          %v1702 = vmul.f32 %v1701, 0.6931472
          %v1703 = vlog2.pop %v1640
          %v1704 = vmul.f32 %v1703, 0.6931472
          %v1705 = vlog2.pop %v1642
          %v1706 = vmul.f32 %v1705, 0.6931472
          %v1707 = vlog2.pop %v1644
          %v1708 = vmul.f32 %v1707, 0.6931472
          %v1709 = vlog2.pop %v1646
          %v1710 = vmul.f32 %v1709, 0.6931472
          %v1711 = vlog2.pop %v1648
          %v1712 = vmul.f32 %v1711, 0.6931472
          %v1713 = vlog2.pop %v1650
          %v1714 = vmul.f32 %v1713, 0.6931472
          %v1715 = vlog2.pop %v1652
          %v1716 = vmul.f32 %v1715, 0.6931472
          %v1717 = vlog2.pop %v1654
          %v1718 = vmul.f32 %v1717, 0.6931472
          %v1719 = vlog2.pop %v1656
          %v1720 = vmul.f32 %v1719, 0.6931472
          %v1721 = vlog2.pop %v1658
          %v1722 = vmul.f32 %v1721, 0.6931472
          %v1723 = vlog2.pop %v1660
          %v1724 = vmul.f32 %v1723, 0.6931472
          %v1725 = vlog2.pop %v1662
          %v1726 = vmul.f32 %v1725, 0.6931472
          %v1727 = vlog2.pop %v1664
          %v1728 = vmul.f32 %v1727, 0.6931472
          %v1729 = vlog2.pop %v1666
          %v1730 = vmul.f32 %v1729, 0.6931472
          %v1731 = vlog2.pop %v1668
          %v1732 = vmul.f32 %v1731, 0.6931472
          %v1733 = vlog2.pop %v1670
          %v1734 = vmul.f32 %v1733, 0.6931472
          %v1735 = vlog2.pop %v1672
          %v1736 = vmul.f32 %v1735, 0.6931472
          %v1737 = vlog2.pop %v1674
          %v1738 = vmul.f32 %v1737, 0.6931472
          %v1739 = vlog2.pop %v1676
          %v1740 = vmul.f32 %v1739, 0.6931472
          %v1741 = vlog2.pop %v1678
          %v1742 = vmul.f32 %v1741, 0.6931472
          %v1743 = vlog2.pop %v1680
          %v1744 = vmul.f32 %v1743, 0.6931472
          %v1745 = vlog2.pop %v1682
          %v1746 = vmul.f32 %v1745, 0.6931472
          %v1747 = vlog2.pop %v1684
          %v1748 = vmul.f32 %v1747, 0.6931472
          %v1749 = vlog2.pop %v1686
          %v1750 = vmul.f32 %v1749, 0.6931472
          %v1751 = vlog2.pop %v1688
          %v1752 = vmul.f32 %v1751, 0.6931472
          %v1753 = vlog2.pop %v1690
          %v1754 = vmul.f32 %v1753, 0.6931472
          %v1755 = vlog2.pop %v1692
          %v1756 = vmul.f32 %v1755, 0.6931472
          %v1757 = vlog2.pop %v1694
          %v1758 = vmul.f32 %v1757, 0.6931472
          %v1759 = vlog2.pop %v1696
          %v1760 = vmul.f32 %v1759, 0.6931472
          %v1761 = vsub.f32 %v1537, %v1698
          %v1762 = vsub.f32 %v1538, %v1700
          %v1763 = vsub.f32 %v1539, %v1702
          %v1764 = vsub.f32 %v1540, %v1704
          %v1765 = vsub.f32 %v1541, %v1706
          %v1766 = vsub.f32 %v1542, %v1708
          %v1767 = vsub.f32 %v1543, %v1710
          %v1768 = vsub.f32 %v1544, %v1712
          %v1769 = vsub.f32 %v1545, %v1714
          %v1770 = vsub.f32 %v1546, %v1716
          %v1771 = vsub.f32 %v1547, %v1718
          %v1772 = vsub.f32 %v1548, %v1720
          %v1773 = vsub.f32 %v1549, %v1722
          %v1774 = vsub.f32 %v1550, %v1724
          %v1775 = vsub.f32 %v1551, %v1726
          %v1776 = vsub.f32 %v1552, %v1728
          %v1777 = vsub.f32 %v1553, %v1730
          %v1778 = vsub.f32 %v1554, %v1732
          %v1779 = vsub.f32 %v1555, %v1734
          %v1780 = vsub.f32 %v1556, %v1736
          %v1781 = vsub.f32 %v1557, %v1738
          %v1782 = vsub.f32 %v1558, %v1740
          %v1783 = vsub.f32 %v1559, %v1742
          %v1784 = vsub.f32 %v1560, %v1744
          %v1785 = vsub.f32 %v1561, %v1746
          %v1786 = vsub.f32 %v1562, %v1748
          %v1787 = vsub.f32 %v1563, %v1750
          %v1788 = vsub.f32 %v1564, %v1752
          %v1789 = vsub.f32 %v1565, %v1754
          %v1790 = vsub.f32 %v1566, %v1756
          %v1791 = vsub.f32 %v1567, %v1758
          %v1792 = vsub.f32 %v1568, %v1760
          %1793 = vst [vmem:[#allocation10] sm:$0xff] %v1761
          %1794 = vst [vmem:[#allocation10 + $0x8] sm:$0xff] %v1762
          %1795 = vst [vmem:[#allocation10 + $0x10] sm:$0xff] %v1763
          %1796 = vst [vmem:[#allocation10 + $0x18] sm:$0xff] %v1764
          %1797 = vst [vmem:[#allocation10 + $0x20] sm:$0xff] %v1765
          %1798 = vst [vmem:[#allocation10 + $0x28] sm:$0xff] %v1766
          %1799 = vst [vmem:[#allocation10 + $0x30] sm:$0xff] %v1767
          %1800 = vst [vmem:[#allocation10 + $0x38] sm:$0xff] %v1768
          %1801 = vst [vmem:[#allocation10 + $0x40] sm:$0xff] %v1769
          %1802 = vst [vmem:[#allocation10 + $0x48] sm:$0xff] %v1770
          %1803 = vst [vmem:[#allocation10 + $0x50] sm:$0xff] %v1771
          %1804 = vst [vmem:[#allocation10 + $0x58] sm:$0xff] %v1772
          %1805 = vst [vmem:[#allocation10 + $0x60] sm:$0xff] %v1773
          %1806 = vst [vmem:[#allocation10 + $0x68] sm:$0xff] %v1774
          %1807 = vst [vmem:[#allocation10 + $0x70] sm:$0xff] %v1775
          %1808 = vst [vmem:[#allocation10 + $0x78] sm:$0xff] %v1776
          %1809 = vst [vmem:[#allocation10 + $0x80] sm:$0xff] %v1777
          %1810 = vst [vmem:[#allocation10 + $0x88] sm:$0xff] %v1778
          %1811 = vst [vmem:[#allocation10 + $0x90] sm:$0xff] %v1779
          %1812 = vst [vmem:[#allocation10 + $0x98] sm:$0xff] %v1780
          %1813 = vst [vmem:[#allocation10 + $0xa0] sm:$0xff] %v1781
          %1814 = vst [vmem:[#allocation10 + $0xa8] sm:$0xff] %v1782
          %1815 = vst [vmem:[#allocation10 + $0xb0] sm:$0xff] %v1783
          %1816 = vst [vmem:[#allocation10 + $0xb8] sm:$0xff] %v1784
          %1817 = vst [vmem:[#allocation10 + $0xc0] sm:$0xff] %v1785
          %1818 = vst [vmem:[#allocation10 + $0xc8] sm:$0xff] %v1786
          %1819 = vst [vmem:[#allocation10 + $0xd0] sm:$0xff] %v1787
          %1820 = vst [vmem:[#allocation10 + $0xd8] sm:$0xff] %v1788
          %1821 = vst [vmem:[#allocation10 + $0xe0] sm:$0xff] %v1789
          %1822 = vst [vmem:[#allocation10 + $0xe8] sm:$0xff] %v1790
          %1823 = vst [vmem:[#allocation10 + $0xf0] sm:$0xff] %v1791
          %1824 = vst [vmem:[#allocation10 + $0xf8] sm:$0xff] %v1792
        $region64: #{tpu_custom_call.1} parent=35 // pred_fallthru
          _
        // Predicated region
        $region65: #{tpu_custom_call.1} parent=35 // pred_check
          %p1825 = pneg %p115
        $region66: #{tpu_custom_call.1} parent=35 // pred_check_branch
          %1827 = sbr.rel (%p1825) target = $region68
        $region67: #{tpu_custom_call.1} parent=35 // pred_region
          %s1829 = ssub.s32 4096, 4096
          %1830 = vsyncadd [#allocation6], %s1829
          %s1831 = sshll.u32 [#allocation10], 4
          %s1832 = int_to_ptr.vmem [resolvable:$true] %s1831
          %1837 = dma.vmem_to_hbm [thread:$0]  %s1832, 4096, %s4, [#allocation6], 128, 128, 8
        $region68: #{tpu_custom_call.1} parent=35 // pred_fallthru
          _
        // Predicated region
        $region69: #{tpu_custom_call.1} parent=35 // pred_check
          %p1838 = pneg %p115
        $region70: #{tpu_custom_call.1} parent=35 // pred_check_branch
          %1840 = sbr.rel (%p1838) target = $region72
        $region71: #{tpu_custom_call.1} parent=35 // pred_region
          %1841 = dma.done [#allocation6], 4096
        $region72: #{tpu_custom_call.1} parent=35 // pred_fallthru
          _
      $region36: #{tpu_custom_call.1} parent=5 // pred_fallthru
        _
      %p1842 = scmp.le.s32.totalorder 2, %s13
      // Predicated region
      $region73: #{tpu_custom_call.1} parent=5 // pred_check
        %p1843 = pneg %p1842
      $region74: #{tpu_custom_call.1} parent=5 // pred_check_branch
        %1845 = sbr.rel (%p1843) target = $region76
      $region75: #{tpu_custom_call.1} parent=5 // pred_region
        %s1846 = ssub.s32 %s13, 2
      $region76: #{tpu_custom_call.1} parent=5 // pred_fallthru
        _
    $region6: #{tpu_custom_call.1} parent=1 // loop_footer
      %s17 = sadd.s32 1, %s13
    $region7: #{tpu_custom_call.1} parent=1 // loop_footer_branch
      %12 = sbr.rel target = $region3
    $region8: #{tpu_custom_call.1} parent=1 // loop_exit
      _
    %1847 = vsyncpa [#allocation5], 1
    %s1848 = scalar_lea.sflag [#allocation5], 1
    %1849 = vsyncpa %s1848, 1
    %1850 = vsyncpa [#allocation8], 1
    %1851 = vsyncpa [#allocation6], 1
    %s1852 = scalar_lea.sflag [#allocation6], 1
    %1853 = vsyncpa %s1852, 1

</llo_original>
